<compile_context>
chip_gen: v7x
topology: tpu7x:2x2x1
jax: 0.10.0
libtpu: 0.0.40
codegen_flags: <defaults>
</compile_context>

<pallas_src>
import functools

import jax
import jax.numpy as jnp
from jax.experimental import pallas as pl
from jax.experimental.pallas import tpu as pltpu


def _bclassifier_kernel(feats_ref, mfeats_ref, w1_ref, b1_ref, w2_ref, b2_ref,
                        wfb_ref, bfc_ref,
                        cout_ref, at_ref, bmat_ref,
                        m_sc, l_sc, qmax_sc,
                        *, n_valid, n_pad):
    step = pl.program_id(0)
    last = pl.num_programs(0) - 1
    tile_n = feats_ref.shape[0]
    ccls, d = bmat_ref.shape

    w1 = w1_ref[...]          # (D, 128)  bf16, VMEM-resident
    b1 = b1_ref[...]          # (1, 128)  f32
    w2 = w2_ref[...]          # (128,128) bf16
    b2 = b2_ref[...]          # (1, 128)  f32

    # q(x) = tanh(relu(x @ W1 + b1) @ W2 + b2); bf16 MXU, f32 accumulation.
    def q_net(x_bf16):
        h = jnp.maximum(
            jnp.dot(x_bf16, w1, preferred_element_type=jnp.float32) + b1, 0.0)
        z = jnp.dot(h.astype(jnp.bfloat16), w2,
                    preferred_element_type=jnp.float32) + b2
        return jnp.tanh(z)

    @pl.when(step == 0)
    def _init():
        m_sc[...] = jnp.full_like(m_sc, -1e30)
        l_sc[...] = jnp.zeros_like(l_sc)
        bmat_ref[...] = jnp.zeros_like(bmat_ref)
        # q_max = q(critical-instance feats): computed once, cached in scratch.
        qmax_sc[...] = q_net(mfeats_ref[...]).astype(jnp.bfloat16)

    x_bf = feats_ref[...]                                # (tile, D) bf16; V == feats
    q_bf = q_net(x_bf).astype(jnp.bfloat16)              # (tile, 128)

    # S^T = q_max @ q^T -> (Ccls, tile): lane-dense, no explicit transpose.
    s_t = jax.lax.dot_general(qmax_sc[...], q_bf, (((1,), (1,)), ((), ())),
                              preferred_element_type=jnp.float32)
    if n_valid < n_pad:  # static: mask zero-padded rows out of the softmax
        col = jax.lax.broadcasted_iota(jnp.int32, s_t.shape, 1) + step * tile_n
        s_t = jnp.where(col < n_valid, s_t, -1e30)

    # Stash raw logits into the resident A^T slab (rescaled in place at the end).
    col0 = pl.multiple_of(step * tile_n, 128)
    at_ref[:, pl.ds(col0, tile_n)] = s_t

    # Online softmax statistics + B accumulation (B accumulated in its output block).
    m_prev = m_sc[...]                                   # (Ccls, 1)
    m_new = jnp.maximum(m_prev, jnp.max(s_t, axis=1, keepdims=True))
    alpha = jnp.exp(m_prev - m_new)
    p = jnp.exp(s_t - m_new)                             # (Ccls, tile)
    l_sc[...] = alpha * l_sc[...] + jnp.sum(p, axis=1, keepdims=True)
    bmat_ref[...] = alpha * bmat_ref[...] + jnp.dot(
        p.astype(jnp.bfloat16), x_bf, preferred_element_type=jnp.float32)
    m_sc[...] = m_new

    @pl.when(step == last)
    def _finalize():
        inv_l = 1.0 / l_sc[...]                          # exact: final outputs
        b_final = bmat_ref[...] * inv_l                  # (Ccls, D) == A^T V
        bmat_ref[...] = b_final
        # A^T = exp(S^T - m) / l, rescaling the whole VMEM-resident slab once.
        at_ref[...] = jnp.exp(at_ref[...] - m_sc[...]) * inv_l
        # Conv1d(Ccls, Ccls, kernel=D): C[o] = sum_i wf[o,i,:] . B[i,:] + bias.
        # Weight comes in lane-dense as (Cin, Cout, D).
        c_acc = bfc_ref[...]                             # (1, Ccls)
        for i in range(ccls):                            # static unroll, small
            c_acc = c_acc + jax.lax.dot_general(
                b_final[i:i + 1, :], wfb_ref[i], (((1,), (1,)), ((), ())),
                preferred_element_type=jnp.float32)
        cout_ref[...] = c_acc


def _round_up(x, m):
    return ((x + m - 1) // m) * m


def _bclassifier_forward(feats, c, params, *, tile_n=1024):
    n, d = feats.shape
    ccls = c.shape[1]
    f32 = jnp.float32
    bf16 = jnp.bfloat16

    # Critical-instance selection in the wrapper: decouples q_max from the N
    # loop.  jnp.argmax tie-break == first max row (matches torch.sort desc).
    idx = jnp.argmax(c, axis=0)
    m_feats = feats[idx].astype(bf16)                    # (Ccls, D)

    w1 = params["w1"].astype(bf16)
    w2 = params["w2"].astype(bf16)
    b1 = params["b1"].astype(f32)
    b2 = params["b2"].astype(f32)
    wfb = jnp.transpose(params["wf"], (1, 0, 2)).astype(f32)  # (Cin, Cout, D)
    bfc = params["bf"].astype(f32)

    # Tile sizing: multiple of 128, clamped to the 128-rounded problem size.
    n128 = _round_up(n, 128)
    tile_n = max(128, min(_round_up(tile_n, 128), n128))
    n_pad = _round_up(n, tile_n)
    num_tiles = n_pad // tile_n

    # Stream feats as bf16 (halves HBM bytes of the only large operand).
    feats_p = feats.astype(bf16)
    if n_pad != n:
        feats_p = jnp.pad(feats_p, ((0, n_pad - n), (0, 0)))

    kernel = functools.partial(_bclassifier_kernel, n_valid=n, n_pad=n_pad)

    # VMEM budget: derive from the working set, leave headroom, cap below
    # v7x's 64 MiB physical VMEM (48 MiB is safe on all generations).
    d128 = _round_up(d, 128)
    c8 = _round_up(ccls, 8)
    vmem_est = (
        2 * tile_n * d128 * 2                  # streamed feats, double-buffered bf16
        + 2 * c8 * n_pad * 4                   # resident A^T slab (+ slack)
        + 2 * c8 * d128 * 4                    # resident B block
        + d128 * 128 * 2 + 128 * 128 * 2       # q weights (bf16)
        + 4 * 128 * 4                          # q biases
        + ccls * c8 * d128 * 4 + 128 * 4       # conv weight (lane-dense) + bias
        + 3 * c8 * 128 * 4                     # m/l/q_max scratch
    )
    vmem_limit = int(min(48 * 1024 * 1024,
                         max(32 * 1024 * 1024, int(vmem_est * 1.5))))

    flops = (2 * n_pad * d * 128 + 2 * n_pad * 128 * 128       # q over instances
             + 2 * ccls * d * 128 + 2 * ccls * 128 * 128       # q over critical rows
             + 2 * n_pad * 128 * ccls                          # attention logits
             + 2 * n_pad * ccls * d                            # B accumulation
             + 2 * ccls * ccls * d)                            # conv1d collapse
    transcendentals = n_pad * 128 + ccls * 128 + 2 * n_pad * ccls
    bytes_accessed = (2 * n_pad * d                            # feats in (bf16)
                      + 4 * (ccls * n_pad + ccls * d + ccls)   # A^T, B, C out
                      + 2 * (d * 128 + 128 * 128 + ccls * d)   # bf16 params
                      + 4 * (ccls * ccls * d + 4 * 128 + ccls))

    c_out, a_t, b_mat = pl.pallas_call(
        kernel,
        out_shape=(
            jax.ShapeDtypeStruct((1, ccls), f32),        # C
            jax.ShapeDtypeStruct((ccls, n_pad), f32),    # A^T
            jax.ShapeDtypeStruct((ccls, d), f32),        # B
        ),
        grid_spec=pltpu.PrefetchScalarGridSpec(
            num_scalar_prefetch=0,
            grid=(num_tiles,),
            in_specs=[
                pl.BlockSpec((tile_n, d), lambda i: (i, 0)),       # feats: streamed bf16
                pl.BlockSpec((ccls, d), lambda i: (0, 0)),         # m_feats: resident
                pl.BlockSpec((d, 128), lambda i: (0, 0)),          # w1
                pl.BlockSpec((1, 128), lambda i: (0, 0)),          # b1
                pl.BlockSpec((128, 128), lambda i: (0, 0)),        # w2
                pl.BlockSpec((1, 128), lambda i: (0, 0)),          # b2
                pl.BlockSpec((ccls, ccls, d), lambda i: (0, 0, 0)),  # wf (Cin,Cout,D)
                pl.BlockSpec((1, ccls), lambda i: (0, 0)),         # bf
            ],
            out_specs=(
                pl.BlockSpec((1, ccls), lambda i: (0, 0)),         # C (finalize)
                pl.BlockSpec((ccls, n_pad), lambda i: (0, 0)),     # A^T (resident slab)
                pl.BlockSpec((ccls, d), lambda i: (0, 0)),         # B (accumulator)
            ),
            scratch_shapes=[
                pltpu.VMEM((ccls, 1), f32),               # running max
                pltpu.VMEM((ccls, 1), f32),               # running sum
                pltpu.VMEM((ccls, 128), bf16),            # cached q_max
            ]),
        compiler_params=pltpu.CompilerParams(
            dimension_semantics=("arbitrary",),            # N axis is a reduction
            vmem_limit_bytes=vmem_limit),
        cost_estimate=pl.CostEstimate(flops=flops,
                                      transcendentals=transcendentals,
                                      bytes_accessed=bytes_accessed),
    )(feats_p, m_feats, w1, b1, w2, b2, wfb, bfc)

    a = a_t[:, :n].T                                       # back to (N, Ccls)
    return c_out, a, b_mat


bclassifier_forward = jax.jit(_bclassifier_forward, static_argnames=("tile_n",))


def init_params(key, input_size, output_class, hidden=128):
    ks = jax.random.split(key, 6)
    s1 = 1.0 / jnp.sqrt(input_size)
    s2 = 1.0 / jnp.sqrt(hidden)
    sf = 1.0 / jnp.sqrt(output_class * input_size)
    return {
        # q = Linear(in,128) -> ReLU -> Linear(128,128) -> Tanh (stored (in,out))
        "w1": jax.random.uniform(ks[0], (input_size, hidden), jnp.float32, -s1, s1),
        "b1": jax.random.uniform(ks[1], (1, hidden), jnp.float32, -s1, s1),
        "w2": jax.random.uniform(ks[2], (hidden, hidden), jnp.float32, -s2, s2),
        "b2": jax.random.uniform(ks[3], (1, hidden), jnp.float32, -s2, s2),
        # fcc = Conv1d(output_class, output_class, kernel_size=input_size)
        "wf": jax.random.uniform(ks[4], (output_class, output_class, input_size),
                                 jnp.float32, -sf, sf),
        "bf": jax.random.uniform(ks[5], (1, output_class), jnp.float32, -sf, sf),
    }


def bclassifier_reference(feats, c, p):
    def q_net(x):
        h = jnp.maximum(x @ p["w1"] + p["b1"], 0.0)
        return jnp.tanh(h @ p["w2"] + p["b2"])
    q = q_net(feats)
    idx = jnp.argmax(c, axis=0)
    m_feats = feats[idx]
    q_max = q_net(m_feats)
    a = jax.nn.softmax(q @ q_max.T, axis=0)
    b = a.T @ feats
    c_out = jnp.einsum("oid,id->o", p["wf"], b)[None, :] + p["bf"]
    return c_out, a, b


if __name__ == "__main__":
    # N=200 -> padded to 256.  tile_n=128 exercises the two-tile online
    # accumulation path; the default (clamped to 256) exercises the
    # single-tile init+finalize-in-one-step path.
    N, INPUT_SIZE, OUTPUT_CLASS = 200, 32, 4

    key = jax.random.PRNGKey(0)
    k_feats, k_c, k_params = jax.random.split(key, 3)

    feats = jax.random.normal(k_feats, (N, INPUT_SIZE), jnp.float32)
    c_scores = jax.random.normal(k_c, (N, OUTPUT_CLASS), jnp.float32)
    params = init_params(k_params, INPUT_SIZE, OUTPUT_CLASS)

    C_ref, A_ref, B_ref = bclassifier_reference(feats, c_scores, params)

    for tn in (128, 1024):
        C_out, A_out, B_out = bclassifier_forward(feats, c_scores, params,
                                                  tile_n=tn)
        jax.block_until_ready((C_out, A_out, B_out))
        assert C_out.shape == (1, OUTPUT_CLASS)
        assert A_out.shape == (N, OUTPUT_CLASS)
        assert B_out.shape == (OUTPUT_CLASS, INPUT_SIZE)
        # Reference is pure f32; kernel uses bf16 MXU operands -> loosened tol.
        assert jnp.allclose(C_out, C_ref, atol=3e-2, rtol=3e-2)
        assert jnp.allclose(A_out, A_ref, atol=3e-2, rtol=3e-2)
        assert jnp.allclose(B_out, B_ref, atol=3e-2, rtol=3e-2)

    print("KERNEL_OK")
</pallas_src>

<mosaic_0001>
module attributes {stable_mosaic.version = 11 : i64} {
  func.func @_bclassifier_kernel(%arg0: i32, %arg1: memref<128x32xbf16, #tpu.memory_space<vmem>>, %arg2: memref<4x32xbf16, #tpu.memory_space<vmem>>, %arg3: memref<32x128xbf16, #tpu.memory_space<vmem>>, %arg4: memref<1x128xf32, #tpu.memory_space<vmem>>, %arg5: memref<128x128xbf16, #tpu.memory_space<vmem>>, %arg6: memref<1x128xf32, #tpu.memory_space<vmem>>, %arg7: memref<4x4x32xf32, #tpu.memory_space<vmem>>, %arg8: memref<1x4xf32, #tpu.memory_space<vmem>>, %arg9: memref<1x4xf32, #tpu.memory_space<vmem>>, %arg10: memref<4x256xf32, #tpu.memory_space<vmem>>, %arg11: memref<4x32xf32, #tpu.memory_space<vmem>>, %arg12: memref<4x1xf32, #tpu.memory_space<vmem>>, %arg13: memref<4x1xf32, #tpu.memory_space<vmem>>, %arg14: memref<4x128xbf16, #tpu.memory_space<vmem>>) attributes {dimension_semantics = [#tpu.dimension_semantics<arbitrary>], iteration_bounds = array<i64: 2>, scalar_prefetch = 0 : i64, scratch_operands = 3 : i64, tpu.core_type = #tpu.core_type<tc>, window_params = [{transform_indices = @transform_0, window_bounds = array<i64: 128, 32>}, {pipeline_mode = #tpu.pipeline_mode<synchronous>, transform_indices = @transform_1, window_bounds = array<i64: 4, 32>}, {pipeline_mode = #tpu.pipeline_mode<synchronous>, transform_indices = @transform_2, window_bounds = array<i64: 32, 128>}, {pipeline_mode = #tpu.pipeline_mode<synchronous>, transform_indices = @transform_3, window_bounds = array<i64: 1, 128>}, {pipeline_mode = #tpu.pipeline_mode<synchronous>, transform_indices = @transform_4, window_bounds = array<i64: 128, 128>}, {pipeline_mode = #tpu.pipeline_mode<synchronous>, transform_indices = @transform_5, window_bounds = array<i64: 1, 128>}, {pipeline_mode = #tpu.pipeline_mode<synchronous>, transform_indices = @transform_6, window_bounds = array<i64: 4, 4, 32>}, {pipeline_mode = #tpu.pipeline_mode<synchronous>, transform_indices = @transform_7, window_bounds = array<i64: 1, 4>}, {pipeline_mode = #tpu.pipeline_mode<synchronous>, transform_indices = @transform_8, window_bounds = array<i64: 1, 4>}, {pipeline_mode = #tpu.pipeline_mode<synchronous>, transform_indices = @transform_9, window_bounds = array<i64: 4, 256>}, {pipeline_mode = #tpu.pipeline_mode<synchronous>, transform_indices = @transform_10, window_bounds = array<i64: 4, 32>}]} {
    %c0 = arith.constant 0 : index
    %c0_0 = arith.constant 0 : index
    %0 = vector.load %arg3[%c0, %c0_0] : memref<32x128xbf16, #tpu.memory_space<vmem>>, vector<32x128xbf16>
    %c0_1 = arith.constant 0 : index
    %c0_2 = arith.constant 0 : index
    %1 = vector.load %arg4[%c0_1, %c0_2] : memref<1x128xf32, #tpu.memory_space<vmem>>, vector<1x128xf32>
    %c0_3 = arith.constant 0 : index
    %c0_4 = arith.constant 0 : index
    %2 = vector.load %arg5[%c0_3, %c0_4] : memref<128x128xbf16, #tpu.memory_space<vmem>>, vector<128x128xbf16>
    %c0_5 = arith.constant 0 : index
    %c0_6 = arith.constant 0 : index
    %3 = vector.load %arg6[%c0_5, %c0_6] : memref<1x128xf32, #tpu.memory_space<vmem>>, vector<1x128xf32>
    %c0_i32 = arith.constant 0 : i32
    %4 = arith.cmpi eq, %arg0, %c0_i32 : i32
    %5 = arith.extui %4 : i1 to i32
    %c0_i32_7 = arith.constant 0 : i32
    %6 = arith.cmpi ne, %5, %c0_i32_7 : i32
    scf.if %6 {
      %cst_34 = arith.constant -1.000000e+30 : f32
      %59 = vector.broadcast %cst_34 : f32 to vector<4x1xf32>
      %c0_35 = arith.constant 0 : index
      %c0_36 = arith.constant 0 : index
      %60 = vector.load %arg12[%c0_35, %c0_36] : memref<4x1xf32, #tpu.memory_space<vmem>>, vector<4x1xf32>
      tpu.vector_store %arg12[%c0_35, %c0_36], %59 {strides = array<i32>} : memref<4x1xf32, #tpu.memory_space<vmem>>, vector<4x1xf32>,
      %cst_37 = arith.constant 0.000000e+00 : f32
      %61 = vector.broadcast %cst_37 : f32 to vector<4x1xf32>
      %c0_38 = arith.constant 0 : index
      %c0_39 = arith.constant 0 : index
      %62 = vector.load %arg13[%c0_38, %c0_39] : memref<4x1xf32, #tpu.memory_space<vmem>>, vector<4x1xf32>
      tpu.vector_store %arg13[%c0_38, %c0_39], %61 {strides = array<i32>} : memref<4x1xf32, #tpu.memory_space<vmem>>, vector<4x1xf32>,
      %cst_40 = arith.constant 0.000000e+00 : f32
      %63 = vector.broadcast %cst_40 : f32 to vector<4x32xf32>
      %c0_41 = arith.constant 0 : index
      %c0_42 = arith.constant 0 : index
      %64 = vector.load %arg11[%c0_41, %c0_42] : memref<4x32xf32, #tpu.memory_space<vmem>>, vector<4x32xf32>
      tpu.vector_store %arg11[%c0_41, %c0_42], %63 {strides = array<i32>} : memref<4x32xf32, #tpu.memory_space<vmem>>, vector<4x32xf32>,
      %c0_43 = arith.constant 0 : index
      %c0_44 = arith.constant 0 : index
      %65 = vector.load %arg2[%c0_43, %c0_44] : memref<4x32xbf16, #tpu.memory_space<vmem>>, vector<4x32xbf16>
      %cst_45 = arith.constant dense<0.000000e+00> : vector<4x128xf32>
      %66 = tpu.matmul %65, %0, %cst_45 {dimension_numbers = #tpu.dot_dimension_numbers<[1], [0], [0], [1], [0, 0, 1, 1], [], []>} : vector<4x32xbf16>, vector<32x128xbf16>, vector<4x128xf32> -> vector<4x128xf32>
      %67 = vector.broadcast %1 : vector<1x128xf32> to vector<4x128xf32>
      %68 = arith.addf %66, %67 : vector<4x128xf32>
      %cst_46 = arith.constant 0.000000e+00 : f32
      %69 = vector.broadcast %cst_46 : f32 to vector<4x128xf32>
      %70 = arith.maximumf %68, %69 : vector<4x128xf32>
      %71 = arith.truncf %70 : vector<4x128xf32> to vector<4x128xbf16>
      %cst_47 = arith.constant dense<0.000000e+00> : vector<4x128xf32>
      %72 = tpu.matmul %71, %2, %cst_47 {dimension_numbers = #tpu.dot_dimension_numbers<[1], [0], [0], [1], [0, 0, 1, 1], [], []>} : vector<4x128xbf16>, vector<128x128xbf16>, vector<4x128xf32> -> vector<4x128xf32>
      %73 = vector.broadcast %3 : vector<1x128xf32> to vector<4x128xf32>
      %74 = arith.addf %72, %73 : vector<4x128xf32>
      %75 = math.tanh %74 : vector<4x128xf32>
      %76 = arith.truncf %75 : vector<4x128xf32> to vector<4x128xbf16>
      %c0_48 = arith.constant 0 : index
      %c0_49 = arith.constant 0 : index
      %77 = vector.load %arg14[%c0_48, %c0_49] : memref<4x128xbf16, #tpu.memory_space<vmem>>, vector<4x128xbf16>
      tpu.vector_store %arg14[%c0_48, %c0_49], %76 {strides = array<i32>} : memref<4x128xbf16, #tpu.memory_space<vmem>>, vector<4x128xbf16>,
    } else {
    }
    %c0_8 = arith.constant 0 : index
    %c0_9 = arith.constant 0 : index
    %7 = vector.load %arg1[%c0_8, %c0_9] : memref<128x32xbf16, #tpu.memory_space<vmem>>, vector<128x32xbf16>
    %cst = arith.constant dense<0.000000e+00> : vector<128x128xf32>
    %8 = tpu.matmul %7, %0, %cst {dimension_numbers = #tpu.dot_dimension_numbers<[1], [0], [0], [1], [0, 0, 1, 1], [], []>} : vector<128x32xbf16>, vector<32x128xbf16>, vector<128x128xf32> -> vector<128x128xf32>
    %9 = vector.broadcast %1 : vector<1x128xf32> to vector<128x128xf32>
    %10 = arith.addf %8, %9 : vector<128x128xf32>
    %cst_10 = arith.constant 0.000000e+00 : f32
    %11 = vector.broadcast %cst_10 : f32 to vector<128x128xf32>
    %12 = arith.maximumf %10, %11 : vector<128x128xf32>
    %13 = arith.truncf %12 : vector<128x128xf32> to vector<128x128xbf16>
    %cst_11 = arith.constant dense<0.000000e+00> : vector<128x128xf32>
    %14 = tpu.matmul %13, %2, %cst_11 {dimension_numbers = #tpu.dot_dimension_numbers<[1], [0], [0], [1], [0, 0, 1, 1], [], []>} : vector<128x128xbf16>, vector<128x128xbf16>, vector<128x128xf32> -> vector<128x128xf32>
    %15 = vector.broadcast %3 : vector<1x128xf32> to vector<128x128xf32>
    %16 = arith.addf %14, %15 : vector<128x128xf32>
    %17 = math.tanh %16 : vector<128x128xf32>
    %18 = arith.truncf %17 : vector<128x128xf32> to vector<128x128xbf16>
    %c0_12 = arith.constant 0 : index
    %c0_13 = arith.constant 0 : index
    %19 = vector.load %arg14[%c0_12, %c0_13] : memref<4x128xbf16, #tpu.memory_space<vmem>>, vector<4x128xbf16>
    %cst_14 = arith.constant dense<0.000000e+00> : vector<4x128xf32>
    %20 = tpu.matmul %19, %18, %cst_14 {dimension_numbers = #tpu.dot_dimension_numbers<[1], [1], [0], [0], [0, 0, 1, 0], [], []>} : vector<4x128xbf16>, vector<128x128xbf16>, vector<4x128xf32> -> vector<4x128xf32>
    %21 = tpu.iota {dimensions = array<i32: 1>} : vector<4x128xi32>
    %c128_i32 = arith.constant 128 : i32
    %22 = arith.muli %arg0, %c128_i32 : i32
    %23 = vector.broadcast %22 : i32 to vector<4x128xi32>
    %24 = arith.addi %21, %23 : vector<4x128xi32>
    %c200_i32 = arith.constant 200 : i32
    %25 = vector.broadcast %c200_i32 : i32 to vector<4x128xi32>
    %26 = arith.cmpi slt, %24, %25 : vector<4x128xi32>
    %cst_15 = arith.constant -1.000000e+30 : f32
    %27 = vector.broadcast %cst_15 : f32 to vector<4x128xf32>
    %28 = arith.select %26, %20, %27 : vector<4x128xi1>, vector<4x128xf32>
    %c128_i32_16 = arith.constant 128 : i32
    %29 = arith.muli %arg0, %c128_i32_16 : i32
    %30 = tpu.assume_multiple %29, 128 : i32
    %c0_17 = arith.constant 0 : index
    %31 = arith.index_cast %30 : i32 to index
    %32 = vector.load %arg10[%c0_17, %31] : memref<4x256xf32, #tpu.memory_space<vmem>>, vector<4x128xf32>
    tpu.vector_store %arg10[%c0_17, %31], %28 {strides = array<i32>} : memref<4x256xf32, #tpu.memory_space<vmem>>, vector<4x128xf32>,
    %c0_18 = arith.constant 0 : index
    %c0_19 = arith.constant 0 : index
    %33 = vector.load %arg12[%c0_18, %c0_19] : memref<4x1xf32, #tpu.memory_space<vmem>>, vector<4x1xf32>
    %cst_20 = arith.constant dense<0xFF800000> : vector<4xf32>
    %34 = vector.multi_reduction <maximumf>, %28, %cst_20 [1] : vector<4x128xf32> to vector<4xf32>
    %35 = vector.shape_cast %34 : vector<4xf32> to vector<4x1xf32>
    %36 = arith.maximumf %33, %35 : vector<4x1xf32>
    %37 = arith.subf %33, %36 : vector<4x1xf32>
    %38 = math.exp %37 : vector<4x1xf32>
    %39 = vector.broadcast %36 : vector<4x1xf32> to vector<4x128xf32>
    %40 = arith.subf %28, %39 : vector<4x128xf32>
    %41 = math.exp %40 : vector<4x128xf32>
    %c0_21 = arith.constant 0 : index
    %c0_22 = arith.constant 0 : index
    %42 = vector.load %arg13[%c0_21, %c0_22] : memref<4x1xf32, #tpu.memory_space<vmem>>, vector<4x1xf32>
    %43 = arith.mulf %38, %42 : vector<4x1xf32>
    %cst_23 = arith.constant dense<0.000000e+00> : vector<4xf32>
    %44 = vector.multi_reduction <add>, %41, %cst_23 [1] : vector<4x128xf32> to vector<4xf32>
    %45 = vector.shape_cast %44 : vector<4xf32> to vector<4x1xf32>
    %46 = arith.addf %43, %45 : vector<4x1xf32>
    %c0_24 = arith.constant 0 : index
    %c0_25 = arith.constant 0 : index
    %47 = vector.load %arg13[%c0_24, %c0_25] : memref<4x1xf32, #tpu.memory_space<vmem>>, vector<4x1xf32>
    tpu.vector_store %arg13[%c0_24, %c0_25], %46 {strides = array<i32>} : memref<4x1xf32, #tpu.memory_space<vmem>>, vector<4x1xf32>,
    %c0_26 = arith.constant 0 : index
    %c0_27 = arith.constant 0 : index
    %48 = vector.load %arg11[%c0_26, %c0_27] : memref<4x32xf32, #tpu.memory_space<vmem>>, vector<4x32xf32>
    %49 = vector.broadcast %38 : vector<4x1xf32> to vector<4x32xf32>
    %50 = arith.mulf %49, %48 : vector<4x32xf32>
    %51 = arith.truncf %41 : vector<4x128xf32> to vector<4x128xbf16>
    %cst_28 = arith.constant dense<0.000000e+00> : vector<4x32xf32>
    %52 = tpu.matmul %51, %7, %cst_28 {dimension_numbers = #tpu.dot_dimension_numbers<[1], [0], [0], [1], [0, 0, 1, 1], [], []>} : vector<4x128xbf16>, vector<128x32xbf16>, vector<4x32xf32> -> vector<4x32xf32>
    %53 = arith.addf %50, %52 : vector<4x32xf32>
    %c0_29 = arith.constant 0 : index
    %c0_30 = arith.constant 0 : index
    %54 = vector.load %arg11[%c0_29, %c0_30] : memref<4x32xf32, #tpu.memory_space<vmem>>, vector<4x32xf32>
    tpu.vector_store %arg11[%c0_29, %c0_30], %53 {strides = array<i32>} : memref<4x32xf32, #tpu.memory_space<vmem>>, vector<4x32xf32>,
    %c0_31 = arith.constant 0 : index
    %c0_32 = arith.constant 0 : index
    %55 = vector.load %arg12[%c0_31, %c0_32] : memref<4x1xf32, #tpu.memory_space<vmem>>, vector<4x1xf32>
    tpu.vector_store %arg12[%c0_31, %c0_32], %36 {strides = array<i32>} : memref<4x1xf32, #tpu.memory_space<vmem>>, vector<4x1xf32>,
    %c1_i32 = arith.constant 1 : i32
    %56 = arith.cmpi eq, %arg0, %c1_i32 : i32
    %57 = arith.extui %56 : i1 to i32
    %c0_i32_33 = arith.constant 0 : i32
    %58 = arith.cmpi ne, %57, %c0_i32_33 : i32
    scf.if %58 {
      %c0_34 = arith.constant 0 : index
      %c0_35 = arith.constant 0 : index
      %59 = vector.load %arg13[%c0_34, %c0_35] : memref<4x1xf32, #tpu.memory_space<vmem>>, vector<4x1xf32>
      %cst_36 = arith.constant 1.000000e+00 : f32
      %60 = vector.broadcast %cst_36 : f32 to vector<4x1xf32>
      %61 = arith.divf %60, %59 : vector<4x1xf32>
      %c0_37 = arith.constant 0 : index
      %c0_38 = arith.constant 0 : index
      %62 = vector.load %arg11[%c0_37, %c0_38] : memref<4x32xf32, #tpu.memory_space<vmem>>, vector<4x32xf32>
      %63 = vector.broadcast %61 : vector<4x1xf32> to vector<4x32xf32>
      %64 = arith.mulf %62, %63 : vector<4x32xf32>
      %c0_39 = arith.constant 0 : index
      %c0_40 = arith.constant 0 : index
      %65 = vector.load %arg11[%c0_39, %c0_40] : memref<4x32xf32, #tpu.memory_space<vmem>>, vector<4x32xf32>
      tpu.vector_store %arg11[%c0_39, %c0_40], %64 {strides = array<i32>} : memref<4x32xf32, #tpu.memory_space<vmem>>, vector<4x32xf32>,
      %c0_41 = arith.constant 0 : index
      %c0_42 = arith.constant 0 : index
      %66 = vector.load %arg10[%c0_41, %c0_42] : memref<4x256xf32, #tpu.memory_space<vmem>>, vector<4x256xf32>
      %c0_43 = arith.constant 0 : index
      %c0_44 = arith.constant 0 : index
      %67 = vector.load %arg12[%c0_43, %c0_44] : memref<4x1xf32, #tpu.memory_space<vmem>>, vector<4x1xf32>
      %68 = vector.broadcast %67 : vector<4x1xf32> to vector<4x256xf32>
      %69 = arith.subf %66, %68 : vector<4x256xf32>
      %70 = math.exp %69 : vector<4x256xf32>
      %71 = vector.broadcast %61 : vector<4x1xf32> to vector<4x256xf32>
      %72 = arith.mulf %70, %71 : vector<4x256xf32>
      %c0_45 = arith.constant 0 : index
      %c0_46 = arith.constant 0 : index
      %73 = vector.load %arg10[%c0_45, %c0_46] : memref<4x256xf32, #tpu.memory_space<vmem>>, vector<4x256xf32>
      tpu.vector_store %arg10[%c0_45, %c0_46], %72 {strides = array<i32>} : memref<4x256xf32, #tpu.memory_space<vmem>>, vector<4x256xf32>,
      %c0_47 = arith.constant 0 : index
      %c0_48 = arith.constant 0 : index
      %74 = vector.load %arg8[%c0_47, %c0_48] : memref<1x4xf32, #tpu.memory_space<vmem>>, vector<1x4xf32>
      %75 = vector.extract_strided_slice %64 {offsets = [0, 0], sizes = [1, 32], strides = [1, 1]} : vector<4x32xf32> to vector<1x32xf32>
      %c0_49 = arith.constant 0 : index
      %c0_50 = arith.constant 0 : index
      %c0_51 = arith.constant 0 : index
      %76 = vector.load %arg7[%c0_49, %c0_50, %c0_51] : memref<4x4x32xf32, #tpu.memory_space<vmem>>, vector<1x4x32xf32>
      %77 = vector.shape_cast %76 : vector<1x4x32xf32> to vector<4x32xf32>
      %cst_52 = arith.constant dense<0.000000e+00> : vector<1x4xf32>
      %78 = tpu.matmul %75, %77, %cst_52 {dimension_numbers = #tpu.dot_dimension_numbers<[1], [1], [0], [0], [0, 0, 1, 0], [], []>} : vector<1x32xf32>, vector<4x32xf32>, vector<1x4xf32> -> vector<1x4xf32>
      %79 = arith.addf %74, %78 : vector<1x4xf32>
      %80 = vector.extract_strided_slice %64 {offsets = [1, 0], sizes = [1, 32], strides = [1, 1]} : vector<4x32xf32> to vector<1x32xf32>
      %c1 = arith.constant 1 : index
      %c0_53 = arith.constant 0 : index
      %c0_54 = arith.constant 0 : index
      %81 = vector.load %arg7[%c1, %c0_53, %c0_54] : memref<4x4x32xf32, #tpu.memory_space<vmem>>, vector<1x4x32xf32>
      %82 = vector.shape_cast %81 : vector<1x4x32xf32> to vector<4x32xf32>
      %cst_55 = arith.constant dense<0.000000e+00> : vector<1x4xf32>
      %83 = tpu.matmul %80, %82, %cst_55 {dimension_numbers = #tpu.dot_dimension_numbers<[1], [1], [0], [0], [0, 0, 1, 0], [], []>} : vector<1x32xf32>, vector<4x32xf32>, vector<1x4xf32> -> vector<1x4xf32>
      %84 = arith.addf %79, %83 : vector<1x4xf32>
      %85 = vector.extract_strided_slice %64 {offsets = [2, 0], sizes = [1, 32], strides = [1, 1]} : vector<4x32xf32> to vector<1x32xf32>
      %c2 = arith.constant 2 : index
      %c0_56 = arith.constant 0 : index
      %c0_57 = arith.constant 0 : index
      %86 = vector.load %arg7[%c2, %c0_56, %c0_57] : memref<4x4x32xf32, #tpu.memory_space<vmem>>, vector<1x4x32xf32>
      %87 = vector.shape_cast %86 : vector<1x4x32xf32> to vector<4x32xf32>
      %cst_58 = arith.constant dense<0.000000e+00> : vector<1x4xf32>
      %88 = tpu.matmul %85, %87, %cst_58 {dimension_numbers = #tpu.dot_dimension_numbers<[1], [1], [0], [0], [0, 0, 1, 0], [], []>} : vector<1x32xf32>, vector<4x32xf32>, vector<1x4xf32> -> vector<1x4xf32>
      %89 = arith.addf %84, %88 : vector<1x4xf32>
      %90 = vector.extract_strided_slice %64 {offsets = [3, 0], sizes = [1, 32], strides = [1, 1]} : vector<4x32xf32> to vector<1x32xf32>
      %c3 = arith.constant 3 : index
      %c0_59 = arith.constant 0 : index
      %c0_60 = arith.constant 0 : index
      %91 = vector.load %arg7[%c3, %c0_59, %c0_60] : memref<4x4x32xf32, #tpu.memory_space<vmem>>, vector<1x4x32xf32>
      %92 = vector.shape_cast %91 : vector<1x4x32xf32> to vector<4x32xf32>
      %cst_61 = arith.constant dense<0.000000e+00> : vector<1x4xf32>
      %93 = tpu.matmul %90, %92, %cst_61 {dimension_numbers = #tpu.dot_dimension_numbers<[1], [1], [0], [0], [0, 0, 1, 0], [], []>} : vector<1x32xf32>, vector<4x32xf32>, vector<1x4xf32> -> vector<1x4xf32>
      %94 = arith.addf %89, %93 : vector<1x4xf32>
      %c0_62 = arith.constant 0 : index
      %c0_63 = arith.constant 0 : index
      %95 = vector.load %arg9[%c0_62, %c0_63] : memref<1x4xf32, #tpu.memory_space<vmem>>, vector<1x4xf32>
      tpu.vector_store %arg9[%c0_62, %c0_63], %94 {strides = array<i32>} : memref<1x4xf32, #tpu.memory_space<vmem>>, vector<1x4xf32>,
    } else {
    }
    return
  }
  func.func @transform_0(%arg0: i32) -> (i32, i32) {
    %c0_i32 = arith.constant 0 : i32
    %c0_i32_0 = arith.constant 0 : i32
    return %arg0, %c0_i32 : i32, i32
  }
  func.func @transform_1(%arg0: i32) -> (i32, i32) {
    %c0_i32 = arith.constant 0 : i32
    %c0_i32_0 = arith.constant 0 : i32
    %c0_i32_1 = arith.constant 0 : i32
    return %c0_i32, %c0_i32_0 : i32, i32
  }
  func.func @transform_2(%arg0: i32) -> (i32, i32) {
    %c0_i32 = arith.constant 0 : i32
    %c0_i32_0 = arith.constant 0 : i32
    %c0_i32_1 = arith.constant 0 : i32
    return %c0_i32, %c0_i32_0 : i32, i32
  }
  func.func @transform_3(%arg0: i32) -> (i32, i32) {
    %c0_i32 = arith.constant 0 : i32
    %c0_i32_0 = arith.constant 0 : i32
    %c0_i32_1 = arith.constant 0 : i32
    return %c0_i32, %c0_i32_0 : i32, i32
  }
  func.func @transform_4(%arg0: i32) -> (i32, i32) {
    %c0_i32 = arith.constant 0 : i32
    %c0_i32_0 = arith.constant 0 : i32
    %c0_i32_1 = arith.constant 0 : i32
    return %c0_i32, %c0_i32_0 : i32, i32
  }
  func.func @transform_5(%arg0: i32) -> (i32, i32) {
    %c0_i32 = arith.constant 0 : i32
    %c0_i32_0 = arith.constant 0 : i32
    %c0_i32_1 = arith.constant 0 : i32
    return %c0_i32, %c0_i32_0 : i32, i32
  }
  func.func @transform_6(%arg0: i32) -> (i32, i32, i32) {
    %c0_i32 = arith.constant 0 : i32
    %c0_i32_0 = arith.constant 0 : i32
    %c0_i32_1 = arith.constant 0 : i32
    %c0_i32_2 = arith.constant 0 : i32
    return %c0_i32, %c0_i32_0, %c0_i32_1 : i32, i32, i32
  }
  func.func @transform_7(%arg0: i32) -> (i32, i32) {
    %c0_i32 = arith.constant 0 : i32
    %c0_i32_0 = arith.constant 0 : i32
    %c0_i32_1 = arith.constant 0 : i32
    return %c0_i32, %c0_i32_0 : i32, i32
  }
  func.func @transform_8(%arg0: i32) -> (i32, i32) {
    %c0_i32 = arith.constant 0 : i32
    %c0_i32_0 = arith.constant 0 : i32
    %c0_i32_1 = arith.constant 0 : i32
    return %c0_i32, %c0_i32_0 : i32, i32
  }
  func.func @transform_9(%arg0: i32) -> (i32, i32) {
    %c0_i32 = arith.constant 0 : i32
    %c0_i32_0 = arith.constant 0 : i32
    %c0_i32_1 = arith.constant 0 : i32
    return %c0_i32, %c0_i32_0 : i32, i32
  }
  func.func @transform_10(%arg0: i32) -> (i32, i32) {
    %c0_i32 = arith.constant 0 : i32
    %c0_i32_0 = arith.constant 0 : i32
    %c0_i32_1 = arith.constant 0 : i32
    return %c0_i32, %c0_i32_0 : i32, i32
  }
}

</mosaic_0001>

<llo_original>
// kernel: _bclassifier_forward.1
$region0: #{_bclassifier_forward.1}
  #allocation0 [shape = 'u32[]', space=smem, size = 0x4, offset = 0x4, fixed_abs, tag = 'smem constant byte address 0x4 - core index']
  #allocation1 [shape = 'u32[144,128]{1,0:T(1,128)}', space=vmem, size = 0x12000, scoped, tag = 'internal scratch']
  #allocation2 [shape = 'f32[4,1]{1,0:T(4,128)}', space=vmem, size = 0x800, scoped, tag = 'scratch operand']
  #allocation3 [shape = 'f32[4,1]{1,0:T(4,128)}', space=vmem, size = 0x800, scoped, tag = 'scratch operand']
  #allocation4 [shape = 'bf16[4,128]{1,0:T(4,128)(2,1)}', space=vmem, size = 0x400, scoped, tag = 'scratch operand']
  %s0 = inlined_call_operand.vmem [shape: bf16[256,32], index: 0, kind: input, shape index: {}]
  %s1 = inlined_call_operand.vmem [shape: bf16[4,32], index: 1, kind: input, shape index: {}]
  %s2 = inlined_call_operand.vmem [shape: bf16[32,128], index: 2, kind: input, shape index: {}]
  %s3 = inlined_call_operand.vmem [shape: f32[1,128], index: 3, kind: input, shape index: {}]
  %s4 = inlined_call_operand.vmem [shape: bf16[128,128], index: 4, kind: input, shape index: {}]
  %s5 = inlined_call_operand.vmem [shape: f32[1,128], index: 5, kind: input, shape index: {}]
  %s6 = inlined_call_operand.vmem [shape: f32[4,4,32], index: 6, kind: input, shape index: {}]
  %s7 = inlined_call_operand.vmem [shape: f32[1,4], index: 7, kind: input, shape index: {}]
  %s8 = inlined_call_operand.hbm [shape: f32[1,4], index: 8, kind: output, shape index: {0}]
  %s9 = inlined_call_operand.vmem [shape: f32[4,256], index: 9, kind: output, shape index: {1}]
  %s10 = inlined_call_operand.hbm [shape: f32[4,32], index: 10, kind: output, shape index: {2}]
  %11 = xla_tuple %s8, %s9, %s10
  %s12 = sld [smem:[#allocation0]]
  $region89: #{_bclassifier_forward.1} parent=0
    _
  %s14 = ssub.s32 1, %s12
  %s15 = scalar_select 0, %s14, %s12
  $region1: #{_bclassifier_forward.1} parent=0
    #allocation5 [shape = 'u8[512]{0}', space=vmem, size = 0x400, scoped, tag = 'output window, operand 0, single buffered']
    #allocation6 [shape = 's32[2]{0}', space=sflag, size = 0x8, scoped, tag = 'scoped memory for _bclassifier_forward.1']
    #allocation7 [shape = 'u8[2048]{0}', space=vmem, size = 0x800, scoped, tag = 'output window, operand 2, single buffered']
    #allocation8 [shape = 's32[1]{0}', space=sflag, size = 0x4, scoped, tag = 'scoped memory for _bclassifier_forward.1']
    %16 = vsyncpa [#allocation6], 0
    %17 = vsyncpa [#allocation8], 0
    loop: start=0, step=1, limit=4
    $region2: #{_bclassifier_forward.1} parent=1 // loop_pre_header
      _
    $region3: #{_bclassifier_forward.1} parent=1 // loop_header
      %s19 = sphi 0, %s23
      %p20 = scmp.ge.s32.totalorder %s19, 4
      %s29 = sphi 0, %s31
      %s32 = sphi 0, %s29
      %s33 = sphi 0, %s32
      %s49 = sphi 0, %s33
      %s53 = sphi 0, %s53
      %s55 = sphi 0, %s53
      %s56 = sphi 0, %s55
      %s70 = sphi 0, %s56
      %s74 = sphi 0, %s74
      %s76 = sphi 0, %s74
      %s77 = sphi 0, %s76
      %s91 = sphi 0, %s77
      %s95 = sphi 0, %s95
      %s97 = sphi 0, %s95
      %s98 = sphi 0, %s97
      %s112 = sphi 0, %s98
      %s116 = sphi 0, %s116
      %s118 = sphi 0, %s116
      %s119 = sphi 0, %s118
      %s133 = sphi 0, %s119
      %s137 = sphi 0, %s137
      %s139 = sphi 0, %s137
      %s140 = sphi 0, %s139
      %s154 = sphi 0, %s140
      %s158 = sphi 0, %s158
      %s160 = sphi 0, %s158
      %s161 = sphi 0, %s160
      %s175 = sphi 0, %s161
      %s179 = sphi 0, %s179
      %s181 = sphi 0, %s179
      %s182 = sphi 0, %s181
      %s196 = sphi 0, %s182
      %s200 = sphi 0, %s200
      %s202 = sphi 0, %s200
      %s203 = sphi 0, %s202
      %s217 = sphi 0, %s203
      %s221 = sphi 0, %s221
      %s223 = sphi 0, %s221
      %s224 = sphi 0, %s223
      %s238 = sphi 0, %s224
      %s242 = sphi 0, %s242
      %s244 = sphi 0, %s242
      %s245 = sphi 0, %s244
      %s259 = sphi 0, %s245
    $region4: #{_bclassifier_forward.1} parent=1 // loop_header_branch
      %22 = sbr.rel (%p20) target = $region8
    $region5: #{_bclassifier_forward.1} parent=1 // loop_body
      %s24 = ssub.s32 %s19, 1
      %s25 = ssub.s32 %s19, 2
      %s26 = sadd.s32 %s19, 1
      %s27 = ssub.s32 %s19, %s26
      %p28 = scmp.eq.s32.totalorder %s27, 0
      %s30 = sadd.s32 %s29, 1
      %s31 = scalar_select %p28, %s29, %s30
      %p34 = pneg %p28
      %p35 = scmp.eq.s32.totalorder %s19, 1
      %p36 = por %p34, %p35
      %p37 = scmp.ne.s32.totalorder %s29, %s32
      %p38 = scmp.eq.s32.totalorder %s19, 0
      %p39 = por %p37, %p38
      %p40 = scmp.ne.s32.totalorder %s29, %s32
      %p41 = scmp.eq.s32.totalorder %s24, 1
      %p42 = por %p40, %p41
      %p43 = scmp.ne.s32.totalorder %s32, %s33
      %p44 = scmp.eq.s32.totalorder %s24, 0
      %p45 = por %p43, %p44
      %p46 = scmp.ne.s32.totalorder %s32, %s33
      %p47 = scmp.eq.s32.totalorder %s25, 1
      %p48 = por %p46, %p47
      %p50 = scmp.ne.s32.totalorder %s33, %s49
      %p51 = scmp.eq.s32.totalorder %s25, 0
      %p52 = por %p50, %p51
      %s54 = sadd.s32 %s53, 1
      %p57 = scmp.eq.s32.totalorder %s19, 1
      %p58 = scmp.ne.s32.totalorder %s53, %s55
      %p59 = scmp.eq.s32.totalorder %s19, 0
      %p60 = por %p58, %p59
      %p61 = scmp.ne.s32.totalorder %s53, %s55
      %p62 = scmp.eq.s32.totalorder %s24, 1
      %p63 = por %p61, %p62
      %p64 = scmp.ne.s32.totalorder %s55, %s56
      %p65 = scmp.eq.s32.totalorder %s24, 0
      %p66 = por %p64, %p65
      %p67 = scmp.ne.s32.totalorder %s55, %s56
      %p68 = scmp.eq.s32.totalorder %s25, 1
      %p69 = por %p67, %p68
      %p71 = scmp.ne.s32.totalorder %s56, %s70
      %p72 = scmp.eq.s32.totalorder %s25, 0
      %p73 = por %p71, %p72
      %s75 = sadd.s32 %s74, 1
      %p78 = scmp.eq.s32.totalorder %s19, 1
      %p79 = scmp.ne.s32.totalorder %s74, %s76
      %p80 = scmp.eq.s32.totalorder %s19, 0
      %p81 = por %p79, %p80
      %p82 = scmp.ne.s32.totalorder %s74, %s76
      %p83 = scmp.eq.s32.totalorder %s24, 1
      %p84 = por %p82, %p83
      %p85 = scmp.ne.s32.totalorder %s76, %s77
      %p86 = scmp.eq.s32.totalorder %s24, 0
      %p87 = por %p85, %p86
      %p88 = scmp.ne.s32.totalorder %s76, %s77
      %p89 = scmp.eq.s32.totalorder %s25, 1
      %p90 = por %p88, %p89
      %p92 = scmp.ne.s32.totalorder %s77, %s91
      %p93 = scmp.eq.s32.totalorder %s25, 0
      %p94 = por %p92, %p93
      %s96 = sadd.s32 %s95, 1
      %p99 = scmp.eq.s32.totalorder %s19, 1
      %p100 = scmp.ne.s32.totalorder %s95, %s97
      %p101 = scmp.eq.s32.totalorder %s19, 0
      %p102 = por %p100, %p101
      %p103 = scmp.ne.s32.totalorder %s95, %s97
      %p104 = scmp.eq.s32.totalorder %s24, 1
      %p105 = por %p103, %p104
      %p106 = scmp.ne.s32.totalorder %s97, %s98
      %p107 = scmp.eq.s32.totalorder %s24, 0
      %p108 = por %p106, %p107
      %p109 = scmp.ne.s32.totalorder %s97, %s98
      %p110 = scmp.eq.s32.totalorder %s25, 1
      %p111 = por %p109, %p110
      %p113 = scmp.ne.s32.totalorder %s98, %s112
      %p114 = scmp.eq.s32.totalorder %s25, 0
      %p115 = por %p113, %p114
      %s117 = sadd.s32 %s116, 1
      %p120 = scmp.eq.s32.totalorder %s19, 1
      %p121 = scmp.ne.s32.totalorder %s116, %s118
      %p122 = scmp.eq.s32.totalorder %s19, 0
      %p123 = por %p121, %p122
      %p124 = scmp.ne.s32.totalorder %s116, %s118
      %p125 = scmp.eq.s32.totalorder %s24, 1
      %p126 = por %p124, %p125
      %p127 = scmp.ne.s32.totalorder %s118, %s119
      %p128 = scmp.eq.s32.totalorder %s24, 0
      %p129 = por %p127, %p128
      %p130 = scmp.ne.s32.totalorder %s118, %s119
      %p131 = scmp.eq.s32.totalorder %s25, 1
      %p132 = por %p130, %p131
      %p134 = scmp.ne.s32.totalorder %s119, %s133
      %p135 = scmp.eq.s32.totalorder %s25, 0
      %p136 = por %p134, %p135
      %s138 = sadd.s32 %s137, 1
      %p141 = scmp.eq.s32.totalorder %s19, 1
      %p142 = scmp.ne.s32.totalorder %s137, %s139
      %p143 = scmp.eq.s32.totalorder %s19, 0
      %p144 = por %p142, %p143
      %p145 = scmp.ne.s32.totalorder %s137, %s139
      %p146 = scmp.eq.s32.totalorder %s24, 1
      %p147 = por %p145, %p146
      %p148 = scmp.ne.s32.totalorder %s139, %s140
      %p149 = scmp.eq.s32.totalorder %s24, 0
      %p150 = por %p148, %p149
      %p151 = scmp.ne.s32.totalorder %s139, %s140
      %p152 = scmp.eq.s32.totalorder %s25, 1
      %p153 = por %p151, %p152
      %p155 = scmp.ne.s32.totalorder %s140, %s154
      %p156 = scmp.eq.s32.totalorder %s25, 0
      %p157 = por %p155, %p156
      %s159 = sadd.s32 %s158, 1
      %p162 = scmp.eq.s32.totalorder %s19, 1
      %p163 = scmp.ne.s32.totalorder %s158, %s160
      %p164 = scmp.eq.s32.totalorder %s19, 0
      %p165 = por %p163, %p164
      %p166 = scmp.ne.s32.totalorder %s158, %s160
      %p167 = scmp.eq.s32.totalorder %s24, 1
      %p168 = por %p166, %p167
      %p169 = scmp.ne.s32.totalorder %s160, %s161
      %p170 = scmp.eq.s32.totalorder %s24, 0
      %p171 = por %p169, %p170
      %p172 = scmp.ne.s32.totalorder %s160, %s161
      %p173 = scmp.eq.s32.totalorder %s25, 1
      %p174 = por %p172, %p173
      %p176 = scmp.ne.s32.totalorder %s161, %s175
      %p177 = scmp.eq.s32.totalorder %s25, 0
      %p178 = por %p176, %p177
      %s180 = sadd.s32 %s179, 1
      %p183 = scmp.eq.s32.totalorder %s19, 1
      %p184 = scmp.ne.s32.totalorder %s179, %s181
      %p185 = scmp.eq.s32.totalorder %s19, 0
      %p186 = por %p184, %p185
      %p187 = scmp.ne.s32.totalorder %s179, %s181
      %p188 = scmp.eq.s32.totalorder %s24, 1
      %p189 = por %p187, %p188
      %p190 = scmp.ne.s32.totalorder %s181, %s182
      %p191 = scmp.eq.s32.totalorder %s24, 0
      %p192 = por %p190, %p191
      %p193 = scmp.ne.s32.totalorder %s181, %s182
      %p194 = scmp.eq.s32.totalorder %s25, 1
      %p195 = por %p193, %p194
      %p197 = scmp.ne.s32.totalorder %s182, %s196
      %p198 = scmp.eq.s32.totalorder %s25, 0
      %p199 = por %p197, %p198
      %s201 = sadd.s32 %s200, 1
      %p204 = scmp.eq.s32.totalorder %s19, 1
      %p205 = scmp.ne.s32.totalorder %s200, %s202
      %p206 = scmp.eq.s32.totalorder %s19, 0
      %p207 = por %p205, %p206
      %p208 = scmp.ne.s32.totalorder %s200, %s202
      %p209 = scmp.eq.s32.totalorder %s24, 1
      %p210 = por %p208, %p209
      %p211 = scmp.ne.s32.totalorder %s202, %s203
      %p212 = scmp.eq.s32.totalorder %s24, 0
      %p213 = por %p211, %p212
      %p214 = scmp.ne.s32.totalorder %s202, %s203
      %p215 = scmp.eq.s32.totalorder %s25, 1
      %p216 = por %p214, %p215
      %p218 = scmp.ne.s32.totalorder %s203, %s217
      %p219 = scmp.eq.s32.totalorder %s25, 0
      %p220 = por %p218, %p219
      %s222 = sadd.s32 %s221, 1
      %p225 = scmp.eq.s32.totalorder %s19, 1
      %p226 = scmp.ne.s32.totalorder %s221, %s223
      %p227 = scmp.eq.s32.totalorder %s19, 0
      %p228 = por %p226, %p227
      %p229 = scmp.ne.s32.totalorder %s221, %s223
      %p230 = scmp.eq.s32.totalorder %s24, 1
      %p231 = por %p229, %p230
      %p232 = scmp.ne.s32.totalorder %s223, %s224
      %p233 = scmp.eq.s32.totalorder %s24, 0
      %p234 = por %p232, %p233
      %p235 = scmp.ne.s32.totalorder %s223, %s224
      %p236 = scmp.eq.s32.totalorder %s25, 1
      %p237 = por %p235, %p236
      %p239 = scmp.ne.s32.totalorder %s224, %s238
      %p240 = scmp.eq.s32.totalorder %s25, 0
      %p241 = por %p239, %p240
      %s243 = sadd.s32 %s242, 1
      %p246 = scmp.eq.s32.totalorder %s19, 1
      %p247 = scmp.ne.s32.totalorder %s242, %s244
      %p248 = scmp.eq.s32.totalorder %s19, 0
      %p249 = por %p247, %p248
      %p250 = scmp.ne.s32.totalorder %s242, %s244
      %p251 = scmp.eq.s32.totalorder %s24, 1
      %p252 = por %p250, %p251
      %p253 = scmp.ne.s32.totalorder %s244, %s245
      %p254 = scmp.eq.s32.totalorder %s24, 0
      %p255 = por %p253, %p254
      %p256 = scmp.ne.s32.totalorder %s244, %s245
      %p257 = scmp.eq.s32.totalorder %s25, 1
      %p258 = por %p256, %p257
      %p260 = scmp.ne.s32.totalorder %s245, %s259
      %p261 = scmp.eq.s32.totalorder %s25, 0
      %p262 = por %p260, %p261
      %p263 = scmp.le.s32.totalorder 1, %s19
      %p264 = scmp.lt.s32.totalorder %s19, 3
      %p265 = pnand %p263, %p264
      %p266 = pneg %p265
      // Predicated region
      $region9: #{_bclassifier_forward.1} parent=5 // pred_check
        _
      $region10: #{_bclassifier_forward.1} parent=5 // pred_check_branch
        %268 = sbr.rel (%p265) target = $region12
      $region11: #{_bclassifier_forward.1} parent=5 // pred_region
        %s269 = ssub.s32 %s19, 1
        // Predicated region
        $region13: #{_bclassifier_forward.1} parent=11 // pred_check
          %p270 = pneg %p66
        $region14: #{_bclassifier_forward.1} parent=11 // pred_check_branch
          %272 = sbr.rel (%p270) target = $region16
        $region15: #{_bclassifier_forward.1} parent=11 // pred_region
          _
        $region16: #{_bclassifier_forward.1} parent=11 // pred_fallthru
          _
        // Predicated region
        $region17: #{_bclassifier_forward.1} parent=11 // pred_check
          %p273 = pneg %p87
        $region18: #{_bclassifier_forward.1} parent=11 // pred_check_branch
          %275 = sbr.rel (%p273) target = $region20
        $region19: #{_bclassifier_forward.1} parent=11 // pred_region
          _
        $region20: #{_bclassifier_forward.1} parent=11 // pred_fallthru
          _
        // Predicated region
        $region21: #{_bclassifier_forward.1} parent=11 // pred_check
          %p276 = pneg %p108
        $region22: #{_bclassifier_forward.1} parent=11 // pred_check_branch
          %278 = sbr.rel (%p276) target = $region24
        $region23: #{_bclassifier_forward.1} parent=11 // pred_region
          _
        $region24: #{_bclassifier_forward.1} parent=11 // pred_fallthru
          _
        // Predicated region
        $region25: #{_bclassifier_forward.1} parent=11 // pred_check
          %p279 = pneg %p129
        $region26: #{_bclassifier_forward.1} parent=11 // pred_check_branch
          %281 = sbr.rel (%p279) target = $region28
        $region27: #{_bclassifier_forward.1} parent=11 // pred_region
          _
        $region28: #{_bclassifier_forward.1} parent=11 // pred_fallthru
          _
        // Predicated region
        $region29: #{_bclassifier_forward.1} parent=11 // pred_check
          %p282 = pneg %p150
        $region30: #{_bclassifier_forward.1} parent=11 // pred_check_branch
          %284 = sbr.rel (%p282) target = $region32
        $region31: #{_bclassifier_forward.1} parent=11 // pred_region
          _
        $region32: #{_bclassifier_forward.1} parent=11 // pred_fallthru
          _
        // Predicated region
        $region33: #{_bclassifier_forward.1} parent=11 // pred_check
          %p285 = pneg %p171
        $region34: #{_bclassifier_forward.1} parent=11 // pred_check_branch
          %287 = sbr.rel (%p285) target = $region36
        $region35: #{_bclassifier_forward.1} parent=11 // pred_region
          _
        $region36: #{_bclassifier_forward.1} parent=11 // pred_fallthru
          _
        // Predicated region
        $region37: #{_bclassifier_forward.1} parent=11 // pred_check
          %p288 = pneg %p192
        $region38: #{_bclassifier_forward.1} parent=11 // pred_check_branch
          %290 = sbr.rel (%p288) target = $region40
        $region39: #{_bclassifier_forward.1} parent=11 // pred_region
          _
        $region40: #{_bclassifier_forward.1} parent=11 // pred_fallthru
          _
      $region12: #{_bclassifier_forward.1} parent=5 // pred_fallthru
        _
      %p291 = scmp.lt.s32.totalorder %s19, 2
      // Predicated region
      $region41: #{_bclassifier_forward.1} parent=5 // pred_check
        %p292 = pneg %p291
      $region42: #{_bclassifier_forward.1} parent=5 // pred_check_branch
        %294 = sbr.rel (%p292) target = $region44
      $region43: #{_bclassifier_forward.1} parent=5 // pred_region
        // Predicated region
        $region45: #{_bclassifier_forward.1} parent=43 // pred_check
          %p295 = pneg %p39
        $region46: #{_bclassifier_forward.1} parent=43 // pred_check_branch
          %297 = sbr.rel (%p295) target = $region48
        $region47: #{_bclassifier_forward.1} parent=43 // pred_region
          %s298 = smul.u32 16, %s19
          %p299 = scmp.lt.s32.totalorder %s298, 31
          %s300 = scalar_select %p299, %s298, 31
          %s301 = smul.addr %s300, 4
          %s302 = scalar_lea.vmem %s0, %s301
          %s303 = smul.u32 16, %s19
        $region48: #{_bclassifier_forward.1} parent=43 // pred_fallthru
          _
      $region44: #{_bclassifier_forward.1} parent=5 // pred_fallthru
        _
      %p304 = scmp.le.s32.totalorder 1, %s19
      %p305 = scmp.lt.s32.totalorder %s19, 3
      %p306 = pnand %p304, %p305
      %p307 = pneg %p306
      // Predicated region
      $region49: #{_bclassifier_forward.1} parent=5 // pred_check
        _
      $region50: #{_bclassifier_forward.1} parent=5 // pred_check_branch
        %309 = sbr.rel (%p306) target = $region52
      $region51: #{_bclassifier_forward.1} parent=5 // pred_region
        %s310 = ssub.s32 %s19, 1
        %s311 = smul.u32 16, %s24
        %p312 = scmp.lt.s32.totalorder %s311, 31
        %s313 = scalar_select %p312, %s311, 31
        %s314 = smul.addr %s313, 4
        %s315 = scalar_lea.vmem %s0, %s314
        %p316 = pneg %p45
        %p317 = pneg %p42
        %p318 = pneg %p66
        %p319 = pneg %p63
        %p320 = pneg %p87
        %p321 = pneg %p84
        %p322 = pneg %p108
        %p323 = pneg %p105
        %p324 = pneg %p129
        %p325 = pneg %p126
        %p326 = pneg %p150
        %p327 = pneg %p147
        %p328 = pneg %p171
        %p329 = pneg %p168
        %p330 = pneg %p192
        %p331 = pneg %p189
        %p332 = pneg %p213
        %p333 = pneg %p210
        %p334 = pneg %p234
        %p335 = pneg %p231
        %p336 = pneg %p255
        %p337 = pneg %p252
        %s338 = smul.u32 16, %s24
        %p339 = scmp.lt.s32.totalorder %s338, 31
        %s340 = scalar_select %p339, %s338, 31
        %s341 = smul.addr %s340, 4
        %s342 = scalar_lea.vmem %s0, %s341
        %s343 = smul.u32 16, %s24
        %v345 = vld [vmem:[%s2] sm:$0xf]
        %v346 = vld [vmem:[%s2 + $0x4] sm:$0xf]
        %v347 = vld [vmem:[%s2 + $0x8] sm:$0xf]
        %v348 = vld [vmem:[%s2 + $0xc] sm:$0xf]
        %v349 = vld [vmem:[%s3] sm:$0x1]
        %v350 = vld [vmem:[%s4] sm:$0xf]
        %v351 = vld [vmem:[%s4 + $0x4] sm:$0xf]
        %v352 = vld [vmem:[%s4 + $0x8] sm:$0xf]
        %v353 = vld [vmem:[%s4 + $0xc] sm:$0xf]
        %v354 = vld [vmem:[%s4 + $0x10] sm:$0xf]
        %v355 = vld [vmem:[%s4 + $0x14] sm:$0xf]
        %v356 = vld [vmem:[%s4 + $0x18] sm:$0xf]
        %v357 = vld [vmem:[%s4 + $0x1c] sm:$0xf]
        %v358 = vld [vmem:[%s4 + $0x20] sm:$0xf]
        %v359 = vld [vmem:[%s4 + $0x24] sm:$0xf]
        %v360 = vld [vmem:[%s4 + $0x28] sm:$0xf]
        %v361 = vld [vmem:[%s4 + $0x2c] sm:$0xf]
        %v362 = vld [vmem:[%s4 + $0x30] sm:$0xf]
        %v363 = vld [vmem:[%s4 + $0x34] sm:$0xf]
        %v364 = vld [vmem:[%s4 + $0x38] sm:$0xf]
        %v365 = vld [vmem:[%s4 + $0x3c] sm:$0xf]
        %v366 = vld [vmem:[%s5] sm:$0x1]
        %p367 = scmp.eq.s32.totalorder %s24, 0
        // Predicated region
        $region53: #{_bclassifier_forward.1} parent=51 // pred_check
          %p368 = pneg %p367
        $region54: #{_bclassifier_forward.1} parent=51 // pred_check_branch
          %370 = sbr.rel (%p368) target = $region56
        $region55: #{_bclassifier_forward.1} parent=51 // pred_region
          %vm371 = vcmask 3072
          %372 = vst.msk [vmem:[#allocation2] sm:$0xf] %vm371, -1e+30
          %373 = vst.msk [vmem:[#allocation3] sm:$0xf] %vm371, 0.0
          %vm374 = vcmask 257024
          %375 = vst.msk [vmem:[#allocation7] sm:$0xf] %vm374, 0.0
          %v376 = vld [vmem:[%s1] sm:$0x3]
          %v378 = vlaneseq
          %v379 = vshrl.u32 %v378, 7
          %v380 = vsub.s32 0, %v379
          %v381 = vrot.slane %v349, %v380
          %v387 = vunpack.c.l.b16 %v345
          %v388 = vunpack.c.l.b16 %v346
          %v389 = vunpack.c.l.b16 %v347
          %v390 = vunpack.c.l.b16 %v348
          %v391 = vpack.c.b16 %v388, %v387
          %v392 = vpack.c.b16 %v390, %v389
          %vm395 = vcmask 261120
          %v397 = vsel %vm395, %v376, 0
          %399 = vmatprep.subr.bf16.mxu0 0
          %400 = vmatpush1.bf16.msra.mxu0 %v391
          %401 = vmatprep.subr.bf16.mxu0 0
          %402 = vmatpush1.bf16.msra.mxu0 %v392
          %403 = vmatprep.subr.bf16.mxu0 0
          %404 = vmatpush1.bf16.msra.mxu0 0
          %405 = vmatprep.subr.bf16.mxu0 0
          %406 = vmatpush1.bf16.msra.mxu0 0
          %407 = vmatprep.subr.bf16.mxu0 0
          %408 = vmatpush1.bf16.msra.mxu0 0
          %409 = vmatprep.subr.bf16.mxu0 0
          %410 = vmatpush1.bf16.msra.mxu0 0
          %411 = vmatprep.subr.bf16.mxu0 0
          %412 = vmatpush1.bf16.msra.mxu0 0
          %413 = vmatprep.subr.bf16.mxu0 0
          %414 = vmatpush1.bf16.msra.mxu0 0
          %415 = vmatprep.subr.bf16.mxu0 0
          %416 = vmatpush1.bf16.msra.mxu0 0
          %417 = vmatprep.subr.bf16.mxu0 0
          %418 = vmatpush1.bf16.msra.mxu0 0
          %419 = vmatprep.subr.bf16.mxu0 0
          %420 = vmatpush1.bf16.msra.mxu0 0
          %421 = vmatprep.subr.bf16.mxu0 0
          %422 = vmatpush1.bf16.msra.mxu0 0
          %423 = vmatprep.subr.bf16.mxu0 0
          %424 = vmatpush1.bf16.msra.mxu0 0
          %425 = vmatprep.subr.bf16.mxu0 0
          %426 = vmatpush1.bf16.msra.mxu0 0
          %427 = vmatprep.subr.bf16.mxu0 0
          %428 = vmatpush1.bf16.msra.mxu0 0
          %429 = vmatprep.subr.bf16.mxu0 0
          %430 = vmatpush1.bf16.msra.mxu0 0
          %431 = vmatprep.mubr.bf16.mxu0 0
          %432 = vmatmul.mubr.bf16.gmra.mrb[0].mxu0 %v397
          %v433 = vpop.f32.mrb[0].mxu0
          %v434 = vadd.f32 %v381, %v433
          %v435 = vpop.f32.mrb[0].mxu0
          %v436 = vpop.f32.mrb[0].mxu0
          %v437 = vpop.f32.mrb[0].mxu0
          %438 = vdwg.mxu0
          %v439 = vmax.f32 %v434, 0.0
          %v440 = vpack.c.bf16 %v439, %v439
          %v442 = vlaneseq
          %v443 = vshrl.u32 %v442, 7
          %v444 = vsub.s32 0, %v443
          %v445 = vrot.slane %v366, %v444
          %v463 = vunpack.c.l.b16 %v350
          %v464 = vunpack.c.l.b16 %v351
          %v465 = vunpack.c.l.b16 %v352
          %v466 = vunpack.c.l.b16 %v353
          %v467 = vunpack.c.l.b16 %v354
          %v468 = vunpack.c.l.b16 %v355
          %v469 = vunpack.c.l.b16 %v356
          %v470 = vunpack.c.l.b16 %v357
          %v471 = vunpack.c.l.b16 %v358
          %v472 = vunpack.c.l.b16 %v359
          %v473 = vunpack.c.l.b16 %v360
          %v474 = vunpack.c.l.b16 %v361
          %v475 = vunpack.c.l.b16 %v362
          %v476 = vunpack.c.l.b16 %v363
          %v477 = vunpack.c.l.b16 %v364
          %v478 = vunpack.c.l.b16 %v365
          %v479 = vpack.c.b16 %v464, %v463
          %v480 = vpack.c.b16 %v466, %v465
          %v481 = vpack.c.b16 %v468, %v467
          %v482 = vpack.c.b16 %v470, %v469
          %v483 = vpack.c.b16 %v472, %v471
          %v484 = vpack.c.b16 %v474, %v473
          %v485 = vpack.c.b16 %v476, %v475
          %v486 = vpack.c.b16 %v478, %v477
          %495 = vmatprep.subr.bf16.mxu0 0
          %496 = vmatpush1.bf16.msra.mxu0 %v479
          %497 = vmatprep.subr.bf16.mxu0 0
          %498 = vmatpush1.bf16.msra.mxu0 %v480
          %499 = vmatprep.subr.bf16.mxu0 0
          %500 = vmatpush1.bf16.msra.mxu0 %v481
          %501 = vmatprep.subr.bf16.mxu0 0
          %502 = vmatpush1.bf16.msra.mxu0 %v482
          %503 = vmatprep.subr.bf16.mxu0 0
          %504 = vmatpush1.bf16.msra.mxu0 %v483
          %505 = vmatprep.subr.bf16.mxu0 0
          %506 = vmatpush1.bf16.msra.mxu0 %v484
          %507 = vmatprep.subr.bf16.mxu0 0
          %508 = vmatpush1.bf16.msra.mxu0 %v485
          %509 = vmatprep.subr.bf16.mxu0 0
          %510 = vmatpush1.bf16.msra.mxu0 %v486
          %511 = vmatprep.subr.bf16.mxu0 0
          %512 = vmatpush1.bf16.msra.mxu0 0
          %513 = vmatprep.subr.bf16.mxu0 0
          %514 = vmatpush1.bf16.msra.mxu0 0
          %515 = vmatprep.subr.bf16.mxu0 0
          %516 = vmatpush1.bf16.msra.mxu0 0
          %517 = vmatprep.subr.bf16.mxu0 0
          %518 = vmatpush1.bf16.msra.mxu0 0
          %519 = vmatprep.subr.bf16.mxu0 0
          %520 = vmatpush1.bf16.msra.mxu0 0
          %521 = vmatprep.subr.bf16.mxu0 0
          %522 = vmatpush1.bf16.msra.mxu0 0
          %523 = vmatprep.subr.bf16.mxu0 0
          %524 = vmatpush1.bf16.msra.mxu0 0
          %525 = vmatprep.subr.bf16.mxu0 0
          %526 = vmatpush1.bf16.msra.mxu0 0
          %527 = vmatprep.mubr.bf16.mxu0 0
          %528 = vmatmul.mubr.bf16.gmra.mrb[0].mxu0 %v440
          %v529 = vpop.f32.mrb[0].mxu0
          %v530 = vadd.f32 %v445, %v529
          %v531 = vpop.f32.mrb[0].mxu0
          %v532 = vpop.f32.mrb[0].mxu0
          %v533 = vpop.f32.mrb[0].mxu0
          %534 = vdwg.mxu0
          %v535 = vtanh.pop %v530
          %v536 = vpack.c.bf16 %v535, %v535
          %537 = vst [vmem:[#allocation4] sm:$0x3] %v536
        $region56: #{_bclassifier_forward.1} parent=51 // pred_fallthru
          _
        %v538 = vld [vmem:[%s342] sm:$0xf]
        %v539 = vld [vmem:[%s342 + $0x4] sm:$0xf]
        %v540 = vld [vmem:[%s342 + $0x8] sm:$0xf]
        %v541 = vld [vmem:[%s342 + $0xc] sm:$0xf]
        %v542 = vld [vmem:[%s342 + $0x10] sm:$0xf]
        %v543 = vld [vmem:[%s342 + $0x14] sm:$0xf]
        %v544 = vld [vmem:[%s342 + $0x18] sm:$0xf]
        %v545 = vld [vmem:[%s342 + $0x1c] sm:$0xf]
        %v546 = vld [vmem:[%s342 + $0x20] sm:$0xf]
        %v547 = vld [vmem:[%s342 + $0x24] sm:$0xf]
        %v548 = vld [vmem:[%s342 + $0x28] sm:$0xf]
        %v549 = vld [vmem:[%s342 + $0x2c] sm:$0xf]
        %v550 = vld [vmem:[%s342 + $0x30] sm:$0xf]
        %v551 = vld [vmem:[%s342 + $0x34] sm:$0xf]
        %v552 = vld [vmem:[%s342 + $0x38] sm:$0xf]
        %v553 = vld [vmem:[%s342 + $0x3c] sm:$0xf]
        %v555 = vlaneseq
        %v556 = vshrl.u32 %v555, 7
        %v557 = vsub.s32 0, %v556
        %v558 = vrot.slane %v349, %v557
        %v576 = vunpack.c.l.b16 %v538
        %v577 = vunpack.c.l.b16 %v539
        %v578 = vunpack.c.l.b16 %v540
        %v579 = vunpack.c.l.b16 %v541
        %v580 = vunpack.c.l.b16 %v542
        %v581 = vunpack.c.l.b16 %v543
        %v582 = vunpack.c.l.b16 %v544
        %v583 = vunpack.c.l.b16 %v545
        %v584 = vunpack.c.l.b16 %v546
        %v585 = vunpack.c.l.b16 %v547
        %v586 = vunpack.c.l.b16 %v548
        %v587 = vunpack.c.l.b16 %v549
        %v588 = vunpack.c.l.b16 %v550
        %v589 = vunpack.c.l.b16 %v551
        %v590 = vunpack.c.l.b16 %v552
        %v591 = vunpack.c.l.b16 %v553
        %v592 = vpack.c.b16 %v577, %v576
        %v593 = vpack.c.b16 %v579, %v578
        %v594 = vpack.c.b16 %v581, %v580
        %v595 = vpack.c.b16 %v583, %v582
        %v596 = vpack.c.b16 %v585, %v584
        %v597 = vpack.c.b16 %v587, %v586
        %v598 = vpack.c.b16 %v589, %v588
        %v599 = vpack.c.b16 %v591, %v590
        %v604 = vunpack.c.l.b16 %v345
        %v605 = vunpack.c.l.b16 %v346
        %v606 = vunpack.c.l.b16 %v347
        %v607 = vunpack.c.l.b16 %v348
        %v608 = vpack.c.b16 %v605, %v604
        %v609 = vpack.c.b16 %v607, %v606
        %vm612 = vcmask 261120
        %v614 = vsel %vm612, %v592, 0
        %v617 = vsel %vm612, %v593, 0
        %v620 = vsel %vm612, %v594, 0
        %v623 = vsel %vm612, %v595, 0
        %v626 = vsel %vm612, %v596, 0
        %v629 = vsel %vm612, %v597, 0
        %v632 = vsel %vm612, %v598, 0
        %v635 = vsel %vm612, %v599, 0
        %637 = vmatprep.subr.bf16.mxu0 0
        %638 = vmatpush1.bf16.msra.mxu0 %v608
        %639 = vmatprep.subr.bf16.mxu0 0
        %640 = vmatpush1.bf16.msra.mxu0 %v609
        %641 = vmatprep.subr.bf16.mxu0 0
        %642 = vmatpush1.bf16.msra.mxu0 0
        %643 = vmatprep.subr.bf16.mxu0 0
        %644 = vmatpush1.bf16.msra.mxu0 0
        %645 = vmatprep.subr.bf16.mxu0 0
        %646 = vmatpush1.bf16.msra.mxu0 0
        %647 = vmatprep.subr.bf16.mxu0 0
        %648 = vmatpush1.bf16.msra.mxu0 0
        %649 = vmatprep.subr.bf16.mxu0 0
        %650 = vmatpush1.bf16.msra.mxu0 0
        %651 = vmatprep.subr.bf16.mxu0 0
        %652 = vmatpush1.bf16.msra.mxu0 0
        %653 = vmatprep.subr.bf16.mxu0 0
        %654 = vmatpush1.bf16.msra.mxu0 0
        %655 = vmatprep.subr.bf16.mxu0 0
        %656 = vmatpush1.bf16.msra.mxu0 0
        %657 = vmatprep.subr.bf16.mxu0 0
        %658 = vmatpush1.bf16.msra.mxu0 0
        %659 = vmatprep.subr.bf16.mxu0 0
        %660 = vmatpush1.bf16.msra.mxu0 0
        %661 = vmatprep.subr.bf16.mxu0 0
        %662 = vmatpush1.bf16.msra.mxu0 0
        %663 = vmatprep.subr.bf16.mxu0 0
        %664 = vmatpush1.bf16.msra.mxu0 0
        %665 = vmatprep.subr.bf16.mxu0 0
        %666 = vmatpush1.bf16.msra.mxu0 0
        %667 = vmatprep.subr.bf16.mxu0 0
        %668 = vmatpush1.bf16.msra.mxu0 0
        %669 = vmatprep.mubr.bf16.mxu0 0
        %670 = vmatmul.mubr.bf16.gmra.mrb[0].mxu0 %v614
        %v671 = vpop.f32.mrb[0].mxu0
        %v672 = vadd.f32 %v558, %v671
        %v673 = vpop.f32.mrb[0].mxu0
        %v674 = vpop.f32.mrb[0].mxu0
        %v675 = vadd.f32 %v558, %v674
        %v676 = vpop.f32.mrb[0].mxu0
        %677 = vmatprep.mubr.bf16.mxu0 0
        %678 = vmatmul.mubr.bf16.gmra.mrb[0].mxu0 %v617
        %v679 = vpop.f32.mrb[0].mxu0
        %v680 = vadd.f32 %v558, %v679
        %v681 = vpop.f32.mrb[0].mxu0
        %v682 = vpop.f32.mrb[0].mxu0
        %v683 = vadd.f32 %v558, %v682
        %v684 = vpop.f32.mrb[0].mxu0
        %685 = vmatprep.mubr.bf16.mxu0 0
        %686 = vmatmul.mubr.bf16.gmra.mrb[0].mxu0 %v620
        %v687 = vpop.f32.mrb[0].mxu0
        %v688 = vadd.f32 %v558, %v687
        %v689 = vpop.f32.mrb[0].mxu0
        %v690 = vpop.f32.mrb[0].mxu0
        %v691 = vadd.f32 %v558, %v690
        %v692 = vpop.f32.mrb[0].mxu0
        %693 = vmatprep.mubr.bf16.mxu0 0
        %694 = vmatmul.mubr.bf16.gmra.mrb[0].mxu0 %v623
        %v695 = vpop.f32.mrb[0].mxu0
        %v696 = vadd.f32 %v558, %v695
        %v697 = vpop.f32.mrb[0].mxu0
        %v698 = vpop.f32.mrb[0].mxu0
        %v699 = vadd.f32 %v558, %v698
        %v700 = vpop.f32.mrb[0].mxu0
        %701 = vmatprep.mubr.bf16.mxu0 0
        %702 = vmatmul.mubr.bf16.gmra.mrb[0].mxu0 %v626
        %v703 = vpop.f32.mrb[0].mxu0
        %v704 = vadd.f32 %v558, %v703
        %v705 = vpop.f32.mrb[0].mxu0
        %v706 = vpop.f32.mrb[0].mxu0
        %v707 = vadd.f32 %v558, %v706
        %v708 = vpop.f32.mrb[0].mxu0
        %709 = vmatprep.mubr.bf16.mxu0 0
        %710 = vmatmul.mubr.bf16.gmra.mrb[0].mxu0 %v629
        %v711 = vpop.f32.mrb[0].mxu0
        %v712 = vadd.f32 %v558, %v711
        %v713 = vpop.f32.mrb[0].mxu0
        %v714 = vpop.f32.mrb[0].mxu0
        %v715 = vadd.f32 %v558, %v714
        %v716 = vpop.f32.mrb[0].mxu0
        %717 = vmatprep.mubr.bf16.mxu0 0
        %718 = vmatmul.mubr.bf16.gmra.mrb[0].mxu0 %v632
        %v719 = vpop.f32.mrb[0].mxu0
        %v720 = vadd.f32 %v558, %v719
        %v721 = vpop.f32.mrb[0].mxu0
        %v722 = vpop.f32.mrb[0].mxu0
        %v723 = vadd.f32 %v558, %v722
        %v724 = vpop.f32.mrb[0].mxu0
        %725 = vmatprep.mubr.bf16.mxu0 0
        %726 = vmatmul.mubr.bf16.gmra.mrb[0].mxu0 %v635
        %v727 = vpop.f32.mrb[0].mxu0
        %v728 = vadd.f32 %v558, %v727
        %v729 = vpop.f32.mrb[0].mxu0
        %v730 = vpop.f32.mrb[0].mxu0
        %v731 = vadd.f32 %v558, %v730
        %v732 = vpop.f32.mrb[0].mxu0
        %733 = vdwg.mxu0
        %v734 = vmax.f32 %v672, 0.0
        %v735 = vmax.f32 %v675, 0.0
        %v736 = vmax.f32 %v680, 0.0
        %v737 = vmax.f32 %v683, 0.0
        %v738 = vmax.f32 %v688, 0.0
        %v739 = vmax.f32 %v691, 0.0
        %v740 = vmax.f32 %v696, 0.0
        %v741 = vmax.f32 %v699, 0.0
        %v742 = vmax.f32 %v704, 0.0
        %v743 = vmax.f32 %v707, 0.0
        %v744 = vmax.f32 %v712, 0.0
        %v745 = vmax.f32 %v715, 0.0
        %v746 = vmax.f32 %v720, 0.0
        %v747 = vmax.f32 %v723, 0.0
        %v748 = vmax.f32 %v728, 0.0
        %v749 = vmax.f32 %v731, 0.0
        %v750 = vpack.c.bf16 %v735, %v734
        %v751 = vpack.c.bf16 %v737, %v736
        %v752 = vpack.c.bf16 %v739, %v738
        %v753 = vpack.c.bf16 %v741, %v740
        %v754 = vpack.c.bf16 %v743, %v742
        %v755 = vpack.c.bf16 %v745, %v744
        %v756 = vpack.c.bf16 %v747, %v746
        %v757 = vpack.c.bf16 %v749, %v748
        %v759 = vlaneseq
        %v760 = vshrl.u32 %v759, 7
        %v761 = vsub.s32 0, %v760
        %v762 = vrot.slane %v366, %v761
        %v780 = vunpack.c.l.b16 %v350
        %v781 = vunpack.c.l.b16 %v351
        %v782 = vunpack.c.l.b16 %v352
        %v783 = vunpack.c.l.b16 %v353
        %v784 = vunpack.c.l.b16 %v354
        %v785 = vunpack.c.l.b16 %v355
        %v786 = vunpack.c.l.b16 %v356
        %v787 = vunpack.c.l.b16 %v357
        %v788 = vunpack.c.l.b16 %v358
        %v789 = vunpack.c.l.b16 %v359
        %v790 = vunpack.c.l.b16 %v360
        %v791 = vunpack.c.l.b16 %v361
        %v792 = vunpack.c.l.b16 %v362
        %v793 = vunpack.c.l.b16 %v363
        %v794 = vunpack.c.l.b16 %v364
        %v795 = vunpack.c.l.b16 %v365
        %v796 = vpack.c.b16 %v781, %v780
        %v797 = vpack.c.b16 %v783, %v782
        %v798 = vpack.c.b16 %v785, %v784
        %v799 = vpack.c.b16 %v787, %v786
        %v800 = vpack.c.b16 %v789, %v788
        %v801 = vpack.c.b16 %v791, %v790
        %v802 = vpack.c.b16 %v793, %v792
        %v803 = vpack.c.b16 %v795, %v794
        %812 = vmatprep.subr.bf16.mxu0 0
        %813 = vmatpush1.bf16.msra.mxu0 %v796
        %814 = vmatprep.subr.bf16.mxu0 0
        %815 = vmatpush1.bf16.msra.mxu0 %v797
        %816 = vmatprep.subr.bf16.mxu0 0
        %817 = vmatpush1.bf16.msra.mxu0 %v798
        %818 = vmatprep.subr.bf16.mxu0 0
        %819 = vmatpush1.bf16.msra.mxu0 %v799
        %820 = vmatprep.subr.bf16.mxu0 0
        %821 = vmatpush1.bf16.msra.mxu0 %v800
        %822 = vmatprep.subr.bf16.mxu0 0
        %823 = vmatpush1.bf16.msra.mxu0 %v801
        %824 = vmatprep.subr.bf16.mxu0 0
        %825 = vmatpush1.bf16.msra.mxu0 %v802
        %826 = vmatprep.subr.bf16.mxu0 0
        %827 = vmatpush1.bf16.msra.mxu0 %v803
        %828 = vmatprep.subr.bf16.mxu0 0
        %829 = vmatpush1.bf16.msra.mxu0 0
        %830 = vmatprep.subr.bf16.mxu0 0
        %831 = vmatpush1.bf16.msra.mxu0 0
        %832 = vmatprep.subr.bf16.mxu0 0
        %833 = vmatpush1.bf16.msra.mxu0 0
        %834 = vmatprep.subr.bf16.mxu0 0
        %835 = vmatpush1.bf16.msra.mxu0 0
        %836 = vmatprep.subr.bf16.mxu0 0
        %837 = vmatpush1.bf16.msra.mxu0 0
        %838 = vmatprep.subr.bf16.mxu0 0
        %839 = vmatpush1.bf16.msra.mxu0 0
        %840 = vmatprep.subr.bf16.mxu0 0
        %841 = vmatpush1.bf16.msra.mxu0 0
        %842 = vmatprep.subr.bf16.mxu0 0
        %843 = vmatpush1.bf16.msra.mxu0 0
        %844 = vmatprep.mubr.bf16.mxu0 0
        %845 = vmatmul.mubr.bf16.gmra.mrb[0].mxu0 %v750
        %v846 = vpop.f32.mrb[0].mxu0
        %v847 = vadd.f32 %v762, %v846
        %v848 = vpop.f32.mrb[0].mxu0
        %v849 = vpop.f32.mrb[0].mxu0
        %v850 = vadd.f32 %v762, %v849
        %v851 = vpop.f32.mrb[0].mxu0
        %852 = vmatprep.mubr.bf16.mxu0 0
        %853 = vmatmul.mubr.bf16.gmra.mrb[0].mxu0 %v751
        %v854 = vpop.f32.mrb[0].mxu0
        %v855 = vadd.f32 %v762, %v854
        %v856 = vpop.f32.mrb[0].mxu0
        %v857 = vpop.f32.mrb[0].mxu0
        %v858 = vadd.f32 %v762, %v857
        %v859 = vpop.f32.mrb[0].mxu0
        %860 = vmatprep.mubr.bf16.mxu0 0
        %861 = vmatmul.mubr.bf16.gmra.mrb[0].mxu0 %v752
        %v862 = vpop.f32.mrb[0].mxu0
        %v863 = vadd.f32 %v762, %v862
        %v864 = vpop.f32.mrb[0].mxu0
        %v865 = vpop.f32.mrb[0].mxu0
        %v866 = vadd.f32 %v762, %v865
        %v867 = vpop.f32.mrb[0].mxu0
        %868 = vmatprep.mubr.bf16.mxu0 0
        %869 = vmatmul.mubr.bf16.gmra.mrb[0].mxu0 %v753
        %v870 = vpop.f32.mrb[0].mxu0
        %v871 = vadd.f32 %v762, %v870
        %v872 = vpop.f32.mrb[0].mxu0
        %v873 = vpop.f32.mrb[0].mxu0
        %v874 = vadd.f32 %v762, %v873
        %v875 = vpop.f32.mrb[0].mxu0
        %876 = vmatprep.mubr.bf16.mxu0 0
        %877 = vmatmul.mubr.bf16.gmra.mrb[0].mxu0 %v754
        %v878 = vpop.f32.mrb[0].mxu0
        %v879 = vadd.f32 %v762, %v878
        %v880 = vpop.f32.mrb[0].mxu0
        %v881 = vpop.f32.mrb[0].mxu0
        %v882 = vadd.f32 %v762, %v881
        %v883 = vpop.f32.mrb[0].mxu0
        %884 = vmatprep.mubr.bf16.mxu0 0
        %885 = vmatmul.mubr.bf16.gmra.mrb[0].mxu0 %v755
        %v886 = vpop.f32.mrb[0].mxu0
        %v887 = vadd.f32 %v762, %v886
        %v888 = vpop.f32.mrb[0].mxu0
        %v889 = vpop.f32.mrb[0].mxu0
        %v890 = vadd.f32 %v762, %v889
        %v891 = vpop.f32.mrb[0].mxu0
        %892 = vmatprep.mubr.bf16.mxu0 0
        %893 = vmatmul.mubr.bf16.gmra.mrb[0].mxu0 %v756
        %v894 = vpop.f32.mrb[0].mxu0
        %v895 = vadd.f32 %v762, %v894
        %v896 = vpop.f32.mrb[0].mxu0
        %v897 = vpop.f32.mrb[0].mxu0
        %v898 = vadd.f32 %v762, %v897
        %v899 = vpop.f32.mrb[0].mxu0
        %900 = vmatprep.mubr.bf16.mxu0 0
        %901 = vmatmul.mubr.bf16.gmra.mrb[0].mxu0 %v757
        %v902 = vpop.f32.mrb[0].mxu0
        %v903 = vadd.f32 %v762, %v902
        %v904 = vpop.f32.mrb[0].mxu0
        %v905 = vpop.f32.mrb[0].mxu0
        %v906 = vadd.f32 %v762, %v905
        %v907 = vpop.f32.mrb[0].mxu0
        %908 = vdwg.mxu0
        %v909 = vtanh.pop %v847
        %v910 = vtanh.pop %v850
        %v911 = vtanh.pop %v855
        %v912 = vtanh.pop %v858
        %v913 = vtanh.pop %v863
        %v914 = vtanh.pop %v866
        %v915 = vtanh.pop %v871
        %v916 = vtanh.pop %v874
        %v917 = vtanh.pop %v879
        %v918 = vtanh.pop %v882
        %v919 = vtanh.pop %v887
        %v920 = vtanh.pop %v890
        %v921 = vtanh.pop %v895
        %v922 = vtanh.pop %v898
        %v923 = vtanh.pop %v903
        %v924 = vtanh.pop %v906
        %v925 = vpack.c.bf16 %v910, %v909
        %v926 = vpack.c.bf16 %v912, %v911
        %v927 = vpack.c.bf16 %v914, %v913
        %v928 = vpack.c.bf16 %v916, %v915
        %v929 = vpack.c.bf16 %v918, %v917
        %v930 = vpack.c.bf16 %v920, %v919
        %v931 = vpack.c.bf16 %v922, %v921
        %v932 = vpack.c.bf16 %v924, %v923
        %v933 = vld [vmem:[#allocation4] sm:$0x3]
        %934 = vmatprep.subr.bf16.mxu0 0
        %935 = vmatpush1.bf16.xpose.msra.mxu0 %v925
        %936 = vmatprep.subr.bf16.mxu0 0
        %937 = vmatpush1.bf16.xpose.msra.mxu0 %v926
        %938 = vmatprep.subr.bf16.mxu0 0
        %939 = vmatpush1.bf16.xpose.msra.mxu0 %v927
        %940 = vmatprep.subr.bf16.mxu0 0
        %941 = vmatpush1.bf16.xpose.msra.mxu0 %v928
        %942 = vmatprep.subr.bf16.mxu0 0
        %943 = vmatpush1.bf16.xpose.msra.mxu0 %v929
        %944 = vmatprep.subr.bf16.mxu0 0
        %945 = vmatpush1.bf16.xpose.msra.mxu0 %v930
        %946 = vmatprep.subr.bf16.mxu0 0
        %947 = vmatpush1.bf16.xpose.msra.mxu0 %v931
        %948 = vmatprep.subr.bf16.mxu0 0
        %949 = vmatpush1.bf16.xpose.msra.mxu0 %v932
        %950 = vmatprep.subr.bf16.mxu0 0
        %951 = vmatpush1.bf16.xpose.msra.mxu0 0
        %952 = vmatprep.subr.bf16.mxu0 0
        %953 = vmatpush1.bf16.xpose.msra.mxu0 0
        %954 = vmatprep.subr.bf16.mxu0 0
        %955 = vmatpush1.bf16.xpose.msra.mxu0 0
        %956 = vmatprep.subr.bf16.mxu0 0
        %957 = vmatpush1.bf16.xpose.msra.mxu0 0
        %958 = vmatprep.subr.bf16.mxu0 0
        %959 = vmatpush1.bf16.xpose.msra.mxu0 0
        %960 = vmatprep.subr.bf16.mxu0 0
        %961 = vmatpush1.bf16.xpose.msra.mxu0 0
        %962 = vmatprep.subr.bf16.mxu0 0
        %963 = vmatpush1.bf16.xpose.msra.mxu0 0
        %964 = vmatprep.subr.bf16.mxu0 0
        %965 = vmatpush1.bf16.xpose.msra.mxu0 0
        %966 = vmatprep.mubr.bf16.mxu0 0
        %967 = vmatmul.mubr.bf16.gmra.mrb[0].mxu0 %v933
        %v968 = vpop.f32.mrb[0].mxu0
        %v969 = vadd.f32 0.0, %v968
        %v970 = vpop.f32.mrb[0].mxu0
        %v971 = vpop.f32.mrb[0].mxu0
        %v972 = vpop.f32.mrb[0].mxu0
        %973 = vdwg.mxu0
        %v974 = vlaneseq
        %v975 = vand.u32 %v974, 127
        %s976 = smul.u32 %s24, 128
        %v977 = vstv %s976
        %v978 = vadd.s32 %v975, %v977
        %vm979 = vcmp.lt.s32.totalorder %v978, 200
        %v980 = vsel %vm979, %v969, -1e+30
        %s981 = sshra.s32 %s976, 7
        %s982 = sand.u32 %s976, 127
        %s983 = smul.addr %s981, 4
        %s984 = scalar_lea.vmem %s9, %s983
        %985 = vst [vmem:[%s984] sm:$0xf] %v980
        %v986 = vld [vmem:[#allocation2] sm:$0xf]
        %vm987 = vcmask 1043456
        %v988 = vsel %vm987, %v980, -inf
        %989 = vmax.xlane.f32.xlu0 %v988
        %v990 = vpop.xlane.xlu0 %989
        %v991 = vmax.f32 %v986, %v990
        %v992 = vsub.f32 %v986, %v991
        %v993 = vmul.f32 %v992, 1.442695
        %v994 = vpow.pop %v993
        %996 = vset.pattern.permute.xlu0 0
        %997 = vperm.xlu0 %996, %v991
        %v998 = vpop.permute.xlu0 %997
        %v1000 = vsub.f32 %v980, %v998
        %v1001 = vmul.f32 %v1000, 1.442695
        %v1002 = vpow.pop %v1001
        %v1003 = vld [vmem:[#allocation3] sm:$0xf]
        %v1004 = vmul.f32 %v994, %v1003
        %v1005 = vsel %vm987, %v1002, 0.0
        %1006 = vadd.xlane.f32.xlu0 %v1005
        %v1007 = vpop.xlane.xlu0 %1006
        %v1008 = vadd.f32 %v1004, %v1007
        %vm1009 = vcmask 3072
        %1010 = vst.msk [vmem:[#allocation3] sm:$0xf] %vm1009, %v1008
        %v1011 = vld [vmem:[#allocation7] sm:$0xf]
        %1013 = vset.pattern.permute.xlu0 0
        %1014 = vperm.xlu0 %1013, %v994
        %v1015 = vpop.permute.xlu0 %1014
        %v1017 = vmul.f32 %v1015, %v1011
        %v1018 = vpack.c.bf16 %v1002, %v1002
        %1027 = vmatprep.subr.bf16.mxu0 0
        %1028 = vmatpush1.bf16.msra.mxu0 %v592
        %1029 = vmatprep.subr.bf16.mxu0 0
        %1030 = vmatpush1.bf16.msra.mxu0 %v593
        %1031 = vmatprep.subr.bf16.mxu0 0
        %1032 = vmatpush1.bf16.msra.mxu0 %v594
        %1033 = vmatprep.subr.bf16.mxu0 0
        %1034 = vmatpush1.bf16.msra.mxu0 %v595
        %1035 = vmatprep.subr.bf16.mxu0 0
        %1036 = vmatpush1.bf16.msra.mxu0 %v596
        %1037 = vmatprep.subr.bf16.mxu0 0
        %1038 = vmatpush1.bf16.msra.mxu0 %v597
        %1039 = vmatprep.subr.bf16.mxu0 0
        %1040 = vmatpush1.bf16.msra.mxu0 %v598
        %1041 = vmatprep.subr.bf16.mxu0 0
        %1042 = vmatpush1.bf16.msra.mxu0 %v599
        %1043 = vmatprep.subr.bf16.mxu0 0
        %1044 = vmatpush1.bf16.msra.mxu0 0
        %1045 = vmatprep.subr.bf16.mxu0 0
        %1046 = vmatpush1.bf16.msra.mxu0 0
        %1047 = vmatprep.subr.bf16.mxu0 0
        %1048 = vmatpush1.bf16.msra.mxu0 0
        %1049 = vmatprep.subr.bf16.mxu0 0
        %1050 = vmatpush1.bf16.msra.mxu0 0
        %1051 = vmatprep.subr.bf16.mxu0 0
        %1052 = vmatpush1.bf16.msra.mxu0 0
        %1053 = vmatprep.subr.bf16.mxu0 0
        %1054 = vmatpush1.bf16.msra.mxu0 0
        %1055 = vmatprep.subr.bf16.mxu0 0
        %1056 = vmatpush1.bf16.msra.mxu0 0
        %1057 = vmatprep.subr.bf16.mxu0 0
        %1058 = vmatpush1.bf16.msra.mxu0 0
        %1059 = vmatprep.mubr.bf16.mxu0 0
        %1060 = vmatmul.mubr.bf16.gmra.mrb[0].mxu0 %v1018
        %v1061 = vpop.f32.mrb[0].mxu0
        %v1062 = vadd.f32 0.0, %v1061
        %v1063 = vpop.f32.mrb[0].mxu0
        %v1064 = vpop.f32.mrb[0].mxu0
        %v1065 = vpop.f32.mrb[0].mxu0
        %1066 = vdwg.mxu0
        %v1067 = vadd.f32 %v1017, %v1062
        %vm1068 = vcmask 257024
        %1069 = vst.msk [vmem:[#allocation7] sm:$0xf] %vm1068, %v1067
        %1070 = vst.msk [vmem:[#allocation2] sm:$0xf] %vm1009, %v991
        %p1071 = scmp.eq.s32.totalorder %s24, 1
        // Predicated region
        $region57: #{_bclassifier_forward.1} parent=51 // pred_check
          %p1072 = pneg %p1071
        $region58: #{_bclassifier_forward.1} parent=51 // pred_check_branch
          %1074 = sbr.rel (%p1072) target = $region60
        $region59: #{_bclassifier_forward.1} parent=51 // pred_region
          %v1075 = vld [vmem:[#allocation3] sm:$0xf]
          %v1076 = vrcp.pop %v1075
          %v1077 = vmul.f32 1.0, %v1076
          %v1078 = vld [vmem:[#allocation7] sm:$0xf]
          %1080 = vset.pattern.permute.xlu0 0
          %1081 = vperm.xlu0 %1080, %v1077
          %v1082 = vpop.permute.xlu0 %1081
          %v1084 = vmul.f32 %v1078, %v1082
          %1085 = vst.msk [vmem:[#allocation7] sm:$0xf] %vm1068, %v1084
          %v1086 = vld [vmem:[%s9] sm:$0xff]
          %v1087 = vld [vmem:[#allocation2] sm:$0xf]
          %1089 = vset.pattern.permute.xlu0 0
          %1090 = vperm.xlu0 %1089, %v1087
          %v1091 = vpop.permute.xlu0 %1090
          %v1093 = vunpack.c.l.s4 839922192
          %v1094 = vunpack.c.0.s8 %v1093
          %v1095 = vlaneseq
          %v1096 = vshrl.u32 %v1095, 7
          %v1097 = vsub.s32 %v1094, %v1096
          %v1098 = vrot.slane %v1091, %v1097
          %v1100 = vsub.f32 %v1086, %v1098
          %v1101 = vmul.f32 %v1100, 1.442695
          %v1102 = vpow.pop %v1101
          %v1104 = vunpack.c.l.s4 839922192
          %v1105 = vunpack.c.0.s8 %v1104
          %v1106 = vlaneseq
          %v1107 = vshrl.u32 %v1106, 7
          %v1108 = vsub.s32 %v1105, %v1107
          %v1109 = vrot.slane %v1082, %v1108
          %v1111 = vmul.f32 %v1102, %v1109
          %1112 = vst [vmem:[%s9] sm:$0xff] %v1111
          %v1113 = vld [vmem:[%s7] sm:$0x1]
          %v1114 = vld [vmem:[%s6] sm:$0xf]
          %v1116 = vsel %vm612, %v1084, 0
          %v1119 = vsel %vm612, %v1114, 0
          %1121 = vmatprep.subr.mxu0 0.0
          %1122 = vmatpush1.xpose.msra.mxu0 %v1119
          %1123 = vmatprep.subr.mxu0 0.0
          %1124 = vmatpush1.xpose.msra.mxu0 0.0
          %1125 = vmatprep.subr.mxu0 0.0
          %1126 = vmatpush1.xpose.msra.mxu0 0.0
          %1127 = vmatprep.subr.mxu0 0.0
          %1128 = vmatpush1.xpose.msra.mxu0 0.0
          %1129 = vmatprep.subr.mxu0 0.0
          %1130 = vmatpush1.xpose.msra.mxu0 0.0
          %1131 = vmatprep.subr.mxu0 0.0
          %1132 = vmatpush1.xpose.msra.mxu0 0.0
          %1133 = vmatprep.subr.mxu0 0.0
          %1134 = vmatpush1.xpose.msra.mxu0 0.0
          %1135 = vmatprep.subr.mxu0 0.0
          %1136 = vmatpush1.xpose.msra.mxu0 0.0
          %1137 = vmatprep.subr.mxu0 0.0
          %1138 = vmatpush1.xpose.msra.mxu0 0.0
          %1139 = vmatprep.subr.mxu0 0.0
          %1140 = vmatpush1.xpose.msra.mxu0 0.0
          %1141 = vmatprep.subr.mxu0 0.0
          %1142 = vmatpush1.xpose.msra.mxu0 0.0
          %1143 = vmatprep.subr.mxu0 0.0
          %1144 = vmatpush1.xpose.msra.mxu0 0.0
          %1145 = vmatprep.subr.mxu0 0.0
          %1146 = vmatpush1.xpose.msra.mxu0 0.0
          %1147 = vmatprep.subr.mxu0 0.0
          %1148 = vmatpush1.xpose.msra.mxu0 0.0
          %1149 = vmatprep.subr.mxu0 0.0
          %1150 = vmatpush1.xpose.msra.mxu0 0.0
          %1151 = vmatprep.subr.mxu0 0.0
          %1152 = vmatpush1.xpose.msra.mxu0 0.0
          %1153 = vmatprep.subr.mxu0 0.0
          %1154 = vmatpush1.xpose.msra.mxu0 0.0
          %1155 = vmatprep.subr.mxu0 0.0
          %1156 = vmatpush1.xpose.msra.mxu0 0.0
          %1157 = vmatprep.subr.mxu0 0.0
          %1158 = vmatpush1.xpose.msra.mxu0 0.0
          %1159 = vmatprep.subr.mxu0 0.0
          %1160 = vmatpush1.xpose.msra.mxu0 0.0
          %1161 = vmatprep.subr.mxu0 0.0
          %1162 = vmatpush1.xpose.msra.mxu0 0.0
          %1163 = vmatprep.subr.mxu0 0.0
          %1164 = vmatpush1.xpose.msra.mxu0 0.0
          %1165 = vmatprep.subr.mxu0 0.0
          %1166 = vmatpush1.xpose.msra.mxu0 0.0
          %1167 = vmatprep.subr.mxu0 0.0
          %1168 = vmatpush1.xpose.msra.mxu0 0.0
          %1169 = vmatprep.subr.mxu0 0.0
          %1170 = vmatpush1.xpose.msra.mxu0 0.0
          %1171 = vmatprep.subr.mxu0 0.0
          %1172 = vmatpush1.xpose.msra.mxu0 0.0
          %1173 = vmatprep.subr.mxu0 0.0
          %1174 = vmatpush1.xpose.msra.mxu0 0.0
          %1175 = vmatprep.subr.mxu0 0.0
          %1176 = vmatpush1.xpose.msra.mxu0 0.0
          %1177 = vmatprep.subr.mxu0 0.0
          %1178 = vmatpush1.xpose.msra.mxu0 0.0
          %1179 = vmatprep.subr.mxu0 0.0
          %1180 = vmatpush1.xpose.msra.mxu0 0.0
          %1181 = vmatprep.subr.mxu0 0.0
          %1182 = vmatpush1.xpose.msra.mxu0 0.0
          %1183 = vmatprep.subr.mxu0 0.0
          %1184 = vmatpush1.xpose.msra.mxu0 0.0
          %1185 = vmatprep.mubr.f32.mxu0 0.0
          %1186 = vmatmul.mubr.f32.gmra.mrb[0].mxu0 %v1116
          %v1187 = vpop.f32.mrb[0].mxu0
          %v1188 = vadd.f32 0.0, %v1187
          %v1189 = vpop.f32.mrb[0].mxu0
          %1190 = vdwg.mxu0
          %v1191 = vadd.f32 %v1113, %v1188
          %s1192 = scalar_lea.vmem %s6, 4
          %v1193 = vld [vmem:[%s1192] sm:$0xf]
          %v1194 = vrot.slane %v1084, 1
          %v1195 = vsel %vm612, %v1194, 0
          %v1198 = vsel %vm612, %v1193, 0
          %1200 = vmatprep.subr.mxu0 0.0
          %1201 = vmatpush1.xpose.msra.mxu0 %v1198
          %1202 = vmatprep.subr.mxu0 0.0
          %1203 = vmatpush1.xpose.msra.mxu0 0.0
          %1204 = vmatprep.subr.mxu0 0.0
          %1205 = vmatpush1.xpose.msra.mxu0 0.0
          %1206 = vmatprep.subr.mxu0 0.0
          %1207 = vmatpush1.xpose.msra.mxu0 0.0
          %1208 = vmatprep.subr.mxu0 0.0
          %1209 = vmatpush1.xpose.msra.mxu0 0.0
          %1210 = vmatprep.subr.mxu0 0.0
          %1211 = vmatpush1.xpose.msra.mxu0 0.0
          %1212 = vmatprep.subr.mxu0 0.0
          %1213 = vmatpush1.xpose.msra.mxu0 0.0
          %1214 = vmatprep.subr.mxu0 0.0
          %1215 = vmatpush1.xpose.msra.mxu0 0.0
          %1216 = vmatprep.subr.mxu0 0.0
          %1217 = vmatpush1.xpose.msra.mxu0 0.0
          %1218 = vmatprep.subr.mxu0 0.0
          %1219 = vmatpush1.xpose.msra.mxu0 0.0
          %1220 = vmatprep.subr.mxu0 0.0
          %1221 = vmatpush1.xpose.msra.mxu0 0.0
          %1222 = vmatprep.subr.mxu0 0.0
          %1223 = vmatpush1.xpose.msra.mxu0 0.0
          %1224 = vmatprep.subr.mxu0 0.0
          %1225 = vmatpush1.xpose.msra.mxu0 0.0
          %1226 = vmatprep.subr.mxu0 0.0
          %1227 = vmatpush1.xpose.msra.mxu0 0.0
          %1228 = vmatprep.subr.mxu0 0.0
          %1229 = vmatpush1.xpose.msra.mxu0 0.0
          %1230 = vmatprep.subr.mxu0 0.0
          %1231 = vmatpush1.xpose.msra.mxu0 0.0
          %1232 = vmatprep.subr.mxu0 0.0
          %1233 = vmatpush1.xpose.msra.mxu0 0.0
          %1234 = vmatprep.subr.mxu0 0.0
          %1235 = vmatpush1.xpose.msra.mxu0 0.0
          %1236 = vmatprep.subr.mxu0 0.0
          %1237 = vmatpush1.xpose.msra.mxu0 0.0
          %1238 = vmatprep.subr.mxu0 0.0
          %1239 = vmatpush1.xpose.msra.mxu0 0.0
          %1240 = vmatprep.subr.mxu0 0.0
          %1241 = vmatpush1.xpose.msra.mxu0 0.0
          %1242 = vmatprep.subr.mxu0 0.0
          %1243 = vmatpush1.xpose.msra.mxu0 0.0
          %1244 = vmatprep.subr.mxu0 0.0
          %1245 = vmatpush1.xpose.msra.mxu0 0.0
          %1246 = vmatprep.subr.mxu0 0.0
          %1247 = vmatpush1.xpose.msra.mxu0 0.0
          %1248 = vmatprep.subr.mxu0 0.0
          %1249 = vmatpush1.xpose.msra.mxu0 0.0
          %1250 = vmatprep.subr.mxu0 0.0
          %1251 = vmatpush1.xpose.msra.mxu0 0.0
          %1252 = vmatprep.subr.mxu0 0.0
          %1253 = vmatpush1.xpose.msra.mxu0 0.0
          %1254 = vmatprep.subr.mxu0 0.0
          %1255 = vmatpush1.xpose.msra.mxu0 0.0
          %1256 = vmatprep.subr.mxu0 0.0
          %1257 = vmatpush1.xpose.msra.mxu0 0.0
          %1258 = vmatprep.subr.mxu0 0.0
          %1259 = vmatpush1.xpose.msra.mxu0 0.0
          %1260 = vmatprep.subr.mxu0 0.0
          %1261 = vmatpush1.xpose.msra.mxu0 0.0
          %1262 = vmatprep.subr.mxu0 0.0
          %1263 = vmatpush1.xpose.msra.mxu0 0.0
          %1264 = vmatprep.mubr.f32.mxu0 0.0
          %1265 = vmatmul.mubr.f32.gmra.mrb[0].mxu0 %v1195
          %v1266 = vpop.f32.mrb[0].mxu0
          %v1267 = vadd.f32 0.0, %v1266
          %v1268 = vpop.f32.mrb[0].mxu0
          %1269 = vdwg.mxu0
          %v1270 = vadd.f32 %v1191, %v1267
          %s1271 = scalar_lea.vmem %s6, 8
          %v1272 = vld [vmem:[%s1271] sm:$0xf]
          %v1273 = vrot.slane %v1084, 2
          %v1274 = vsel %vm612, %v1273, 0
          %v1277 = vsel %vm612, %v1272, 0
          %1279 = vmatprep.subr.mxu0 0.0
          %1280 = vmatpush1.xpose.msra.mxu0 %v1277
          %1281 = vmatprep.subr.mxu0 0.0
          %1282 = vmatpush1.xpose.msra.mxu0 0.0
          %1283 = vmatprep.subr.mxu0 0.0
          %1284 = vmatpush1.xpose.msra.mxu0 0.0
          %1285 = vmatprep.subr.mxu0 0.0
          %1286 = vmatpush1.xpose.msra.mxu0 0.0
          %1287 = vmatprep.subr.mxu0 0.0
          %1288 = vmatpush1.xpose.msra.mxu0 0.0
          %1289 = vmatprep.subr.mxu0 0.0
          %1290 = vmatpush1.xpose.msra.mxu0 0.0
          %1291 = vmatprep.subr.mxu0 0.0
          %1292 = vmatpush1.xpose.msra.mxu0 0.0
          %1293 = vmatprep.subr.mxu0 0.0
          %1294 = vmatpush1.xpose.msra.mxu0 0.0
          %1295 = vmatprep.subr.mxu0 0.0
          %1296 = vmatpush1.xpose.msra.mxu0 0.0
          %1297 = vmatprep.subr.mxu0 0.0
          %1298 = vmatpush1.xpose.msra.mxu0 0.0
          %1299 = vmatprep.subr.mxu0 0.0
          %1300 = vmatpush1.xpose.msra.mxu0 0.0
          %1301 = vmatprep.subr.mxu0 0.0
          %1302 = vmatpush1.xpose.msra.mxu0 0.0
          %1303 = vmatprep.subr.mxu0 0.0
          %1304 = vmatpush1.xpose.msra.mxu0 0.0
          %1305 = vmatprep.subr.mxu0 0.0
          %1306 = vmatpush1.xpose.msra.mxu0 0.0
          %1307 = vmatprep.subr.mxu0 0.0
          %1308 = vmatpush1.xpose.msra.mxu0 0.0
          %1309 = vmatprep.subr.mxu0 0.0
          %1310 = vmatpush1.xpose.msra.mxu0 0.0
          %1311 = vmatprep.subr.mxu0 0.0
          %1312 = vmatpush1.xpose.msra.mxu0 0.0
          %1313 = vmatprep.subr.mxu0 0.0
          %1314 = vmatpush1.xpose.msra.mxu0 0.0
          %1315 = vmatprep.subr.mxu0 0.0
          %1316 = vmatpush1.xpose.msra.mxu0 0.0
          %1317 = vmatprep.subr.mxu0 0.0
          %1318 = vmatpush1.xpose.msra.mxu0 0.0
          %1319 = vmatprep.subr.mxu0 0.0
          %1320 = vmatpush1.xpose.msra.mxu0 0.0
          %1321 = vmatprep.subr.mxu0 0.0
          %1322 = vmatpush1.xpose.msra.mxu0 0.0
          %1323 = vmatprep.subr.mxu0 0.0
          %1324 = vmatpush1.xpose.msra.mxu0 0.0
          %1325 = vmatprep.subr.mxu0 0.0
          %1326 = vmatpush1.xpose.msra.mxu0 0.0
          %1327 = vmatprep.subr.mxu0 0.0
          %1328 = vmatpush1.xpose.msra.mxu0 0.0
          %1329 = vmatprep.subr.mxu0 0.0
          %1330 = vmatpush1.xpose.msra.mxu0 0.0
          %1331 = vmatprep.subr.mxu0 0.0
          %1332 = vmatpush1.xpose.msra.mxu0 0.0
          %1333 = vmatprep.subr.mxu0 0.0
          %1334 = vmatpush1.xpose.msra.mxu0 0.0
          %1335 = vmatprep.subr.mxu0 0.0
          %1336 = vmatpush1.xpose.msra.mxu0 0.0
          %1337 = vmatprep.subr.mxu0 0.0
          %1338 = vmatpush1.xpose.msra.mxu0 0.0
          %1339 = vmatprep.subr.mxu0 0.0
          %1340 = vmatpush1.xpose.msra.mxu0 0.0
          %1341 = vmatprep.subr.mxu0 0.0
          %1342 = vmatpush1.xpose.msra.mxu0 0.0
          %1343 = vmatprep.mubr.f32.mxu0 0.0
          %1344 = vmatmul.mubr.f32.gmra.mrb[0].mxu0 %v1274
          %v1345 = vpop.f32.mrb[0].mxu0
          %v1346 = vadd.f32 0.0, %v1345
          %v1347 = vpop.f32.mrb[0].mxu0
          %1348 = vdwg.mxu0
          %v1349 = vadd.f32 %v1270, %v1346
          %s1350 = scalar_lea.vmem %s6, 12
          %v1351 = vld [vmem:[%s1350] sm:$0xf]
          %v1352 = vrot.slane %v1084, 3
          %v1353 = vsel %vm612, %v1352, 0
          %v1356 = vsel %vm612, %v1351, 0
          %1358 = vmatprep.subr.mxu0 0.0
          %1359 = vmatpush1.xpose.msra.mxu0 %v1356
          %1360 = vmatprep.subr.mxu0 0.0
          %1361 = vmatpush1.xpose.msra.mxu0 0.0
          %1362 = vmatprep.subr.mxu0 0.0
          %1363 = vmatpush1.xpose.msra.mxu0 0.0
          %1364 = vmatprep.subr.mxu0 0.0
          %1365 = vmatpush1.xpose.msra.mxu0 0.0
          %1366 = vmatprep.subr.mxu0 0.0
          %1367 = vmatpush1.xpose.msra.mxu0 0.0
          %1368 = vmatprep.subr.mxu0 0.0
          %1369 = vmatpush1.xpose.msra.mxu0 0.0
          %1370 = vmatprep.subr.mxu0 0.0
          %1371 = vmatpush1.xpose.msra.mxu0 0.0
          %1372 = vmatprep.subr.mxu0 0.0
          %1373 = vmatpush1.xpose.msra.mxu0 0.0
          %1374 = vmatprep.subr.mxu0 0.0
          %1375 = vmatpush1.xpose.msra.mxu0 0.0
          %1376 = vmatprep.subr.mxu0 0.0
          %1377 = vmatpush1.xpose.msra.mxu0 0.0
          %1378 = vmatprep.subr.mxu0 0.0
          %1379 = vmatpush1.xpose.msra.mxu0 0.0
          %1380 = vmatprep.subr.mxu0 0.0
          %1381 = vmatpush1.xpose.msra.mxu0 0.0
          %1382 = vmatprep.subr.mxu0 0.0
          %1383 = vmatpush1.xpose.msra.mxu0 0.0
          %1384 = vmatprep.subr.mxu0 0.0
          %1385 = vmatpush1.xpose.msra.mxu0 0.0
          %1386 = vmatprep.subr.mxu0 0.0
          %1387 = vmatpush1.xpose.msra.mxu0 0.0
          %1388 = vmatprep.subr.mxu0 0.0
          %1389 = vmatpush1.xpose.msra.mxu0 0.0
          %1390 = vmatprep.subr.mxu0 0.0
          %1391 = vmatpush1.xpose.msra.mxu0 0.0
          %1392 = vmatprep.subr.mxu0 0.0
          %1393 = vmatpush1.xpose.msra.mxu0 0.0
          %1394 = vmatprep.subr.mxu0 0.0
          %1395 = vmatpush1.xpose.msra.mxu0 0.0
          %1396 = vmatprep.subr.mxu0 0.0
          %1397 = vmatpush1.xpose.msra.mxu0 0.0
          %1398 = vmatprep.subr.mxu0 0.0
          %1399 = vmatpush1.xpose.msra.mxu0 0.0
          %1400 = vmatprep.subr.mxu0 0.0
          %1401 = vmatpush1.xpose.msra.mxu0 0.0
          %1402 = vmatprep.subr.mxu0 0.0
          %1403 = vmatpush1.xpose.msra.mxu0 0.0
          %1404 = vmatprep.subr.mxu0 0.0
          %1405 = vmatpush1.xpose.msra.mxu0 0.0
          %1406 = vmatprep.subr.mxu0 0.0
          %1407 = vmatpush1.xpose.msra.mxu0 0.0
          %1408 = vmatprep.subr.mxu0 0.0
          %1409 = vmatpush1.xpose.msra.mxu0 0.0
          %1410 = vmatprep.subr.mxu0 0.0
          %1411 = vmatpush1.xpose.msra.mxu0 0.0
          %1412 = vmatprep.subr.mxu0 0.0
          %1413 = vmatpush1.xpose.msra.mxu0 0.0
          %1414 = vmatprep.subr.mxu0 0.0
          %1415 = vmatpush1.xpose.msra.mxu0 0.0
          %1416 = vmatprep.subr.mxu0 0.0
          %1417 = vmatpush1.xpose.msra.mxu0 0.0
          %1418 = vmatprep.subr.mxu0 0.0
          %1419 = vmatpush1.xpose.msra.mxu0 0.0
          %1420 = vmatprep.subr.mxu0 0.0
          %1421 = vmatpush1.xpose.msra.mxu0 0.0
          %1422 = vmatprep.mubr.f32.mxu0 0.0
          %1423 = vmatmul.mubr.f32.gmra.mrb[0].mxu0 %v1353
          %v1424 = vpop.f32.mrb[0].mxu0
          %v1425 = vadd.f32 0.0, %v1424
          %v1426 = vpop.f32.mrb[0].mxu0
          %1427 = vdwg.mxu0
          %v1428 = vadd.f32 %v1349, %v1425
          %vm1429 = vcmask 24576
          %1430 = vst.msk [vmem:[#allocation5] sm:$0x1] %vm1429, %v1428
        $region60: #{_bclassifier_forward.1} parent=51 // pred_fallthru
          _
        // Predicated region
        $region61: #{_bclassifier_forward.1} parent=51 // pred_check
          %p1431 = pneg %p210
        $region62: #{_bclassifier_forward.1} parent=51 // pred_check_branch
          %1433 = sbr.rel (%p1431) target = $region64
        $region63: #{_bclassifier_forward.1} parent=51 // pred_region
          %s1435 = ssub.s32 16, 16
          %1436 = vsyncadd [#allocation6], %s1435
          %s1438 = sshll.u32 [#allocation5], 4
          %s1439 = int_to_ptr.vmem [resolvable:$true] %s1438
          %1441 = dma.vmem_to_hbm [thread:$0]  %s1439, 16, %s8, [#allocation6]
        $region64: #{_bclassifier_forward.1} parent=51 // pred_fallthru
          _
        // Predicated region
        $region65: #{_bclassifier_forward.1} parent=51 // pred_check
          %p1442 = pneg %p231
        $region66: #{_bclassifier_forward.1} parent=51 // pred_check_branch
          %1444 = sbr.rel (%p1442) target = $region68
        $region67: #{_bclassifier_forward.1} parent=51 // pred_region
          _
        $region68: #{_bclassifier_forward.1} parent=51 // pred_fallthru
          _
        // Predicated region
        $region69: #{_bclassifier_forward.1} parent=51 // pred_check
          %p1445 = pneg %p252
        $region70: #{_bclassifier_forward.1} parent=51 // pred_check_branch
          %1447 = sbr.rel (%p1445) target = $region72
        $region71: #{_bclassifier_forward.1} parent=51 // pred_region
          %s1449 = ssub.s32 64, 64
          %1450 = vsyncadd [#allocation8], %s1449
          %s1452 = sshll.u32 [#allocation7], 4
          %s1453 = int_to_ptr.vmem [resolvable:$true] %s1452
          %1455 = dma.vmem_to_hbm [thread:$0]  %s1453, 64, %s10, [#allocation8]
        $region72: #{_bclassifier_forward.1} parent=51 // pred_fallthru
          _
        // Predicated region
        $region73: #{_bclassifier_forward.1} parent=51 // pred_check
          %p1456 = pneg %p210
        $region74: #{_bclassifier_forward.1} parent=51 // pred_check_branch
          %1458 = sbr.rel (%p1456) target = $region76
        $region75: #{_bclassifier_forward.1} parent=51 // pred_region
          %1459 = dma.done [#allocation6], 16
        $region76: #{_bclassifier_forward.1} parent=51 // pred_fallthru
          _
        // Predicated region
        $region77: #{_bclassifier_forward.1} parent=51 // pred_check
          %p1460 = pneg %p231
        $region78: #{_bclassifier_forward.1} parent=51 // pred_check_branch
          %1462 = sbr.rel (%p1460) target = $region80
        $region79: #{_bclassifier_forward.1} parent=51 // pred_region
          _
        $region80: #{_bclassifier_forward.1} parent=51 // pred_fallthru
          _
        // Predicated region
        $region81: #{_bclassifier_forward.1} parent=51 // pred_check
          %p1463 = pneg %p252
        $region82: #{_bclassifier_forward.1} parent=51 // pred_check_branch
          %1465 = sbr.rel (%p1463) target = $region84
        $region83: #{_bclassifier_forward.1} parent=51 // pred_region
          %1466 = dma.done [#allocation8], 64
        $region84: #{_bclassifier_forward.1} parent=51 // pred_fallthru
          _
      $region52: #{_bclassifier_forward.1} parent=5 // pred_fallthru
        _
      %p1467 = scmp.le.s32.totalorder 2, %s19
      // Predicated region
      $region85: #{_bclassifier_forward.1} parent=5 // pred_check
        %p1468 = pneg %p1467
      $region86: #{_bclassifier_forward.1} parent=5 // pred_check_branch
        %1470 = sbr.rel (%p1468) target = $region88
      $region87: #{_bclassifier_forward.1} parent=5 // pred_region
        %s1471 = ssub.s32 %s19, 2
      $region88: #{_bclassifier_forward.1} parent=5 // pred_fallthru
        _
    $region6: #{_bclassifier_forward.1} parent=1 // loop_footer
      %s23 = sadd.s32 1, %s19
    $region7: #{_bclassifier_forward.1} parent=1 // loop_footer_branch
      %18 = sbr.rel target = $region3
    $region8: #{_bclassifier_forward.1} parent=1 // loop_exit
      _
    %1472 = vsyncpa [#allocation6], 1
    %s1473 = scalar_lea.sflag [#allocation6], 1
    %1474 = vsyncpa %s1473, 1
    %1475 = vsyncpa [#allocation8], 1

</llo_original>
